<compile_context>
chip_gen: v6e
topology: v6e:2x2x1
jax: 0.10.0
libtpu: 0.0.40
codegen_flags: <defaults>
</compile_context>

<pallas_src>
import functools
import math

import jax
import jax.numpy as jnp
import numpy as np
from jax.experimental import pallas as pl
from jax.experimental.pallas import tpu as pltpu  # noqa: F401  (kept for TPU backend parity)

HEADS = 4
D_MODEL = 32
D_HEAD = D_MODEL // HEADS


# ----------------------------- fused Pallas kernel ---------------------------

def _mha_kernel(*refs, mode, masked, b, lq, lk, d, heads, dh):
    """Single-invocation kernel (no grid). Everything lives in VMEM / registers.

    mode: "qkv" (query is key is value) | "kv" (key is value) | "sep".
    Input refs (in order): q[, k][, v][, mask_i8], projection weights (fused per
    mode), wo, bo.  Output ref: (B*Lq, D).
    """
    it = iter(refs)
    q_ref = next(it)
    k_ref = q_ref if mode == "qkv" else next(it)
    v_ref = next(it) if mode == "sep" else k_ref
    m_ref = next(it) if masked else None
    if mode == "qkv":
        w_qkv_ref, b_qkv_ref = next(it), next(it)
    elif mode == "kv":
        w_q_ref, b_q_ref, w_kv_ref, b_kv_ref = next(it), next(it), next(it), next(it)
    else:
        w_q_ref, b_q_ref = next(it), next(it)
        w_k_ref, b_k_ref = next(it), next(it)
        w_v_ref, b_v_ref = next(it), next(it)
    wo_ref, bo_ref, o_ref = next(it), next(it), next(it)

    f32 = jnp.float32

    # ---- projections on row-flattened operands (scale already folded into Wq) ----
    if mode == "qkv":
        proj = jnp.dot(q_ref[...], w_qkv_ref[...],
                       preferred_element_type=f32) + b_qkv_ref[...]        # (B*L, 3D)
        qp, kp, vp = proj[:, :d], proj[:, d:2 * d], proj[:, 2 * d:]
    elif mode == "kv":
        qp = jnp.dot(q_ref[...], w_q_ref[...],
                     preferred_element_type=f32) + b_q_ref[...]            # (B*Lq, D)
        kvp = jnp.dot(k_ref[...], w_kv_ref[...],
                      preferred_element_type=f32) + b_kv_ref[...]          # (B*Lk, 2D)
        kp, vp = kvp[:, :d], kvp[:, d:]
    else:
        qp = jnp.dot(q_ref[...], w_q_ref[...],
                     preferred_element_type=f32) + b_q_ref[...]
        kp = jnp.dot(k_ref[...], w_k_ref[...],
                     preferred_element_type=f32) + b_k_ref[...]
        vp = jnp.dot(v_ref[...], w_v_ref[...],
                     preferred_element_type=f32) + b_v_ref[...]

    # batch-separated views (leading-dim reshapes only; layout-neutral)
    qp3 = qp.reshape(b, lq, d)
    kp3 = kp.reshape(b, lk, d)
    vp3 = vp.reshape(b, lk, d)

    if masked:
        # int8 mask, loaded + converted once, reused for every head
        mask_bool = m_ref[...].astype(jnp.int32) != 0                      # (b, lq, lk)

    wo = wo_ref[...]                                                       # (D, D)
    acc = jnp.zeros((b * lq, d), f32)                                      # register accumulator

    # static unroll over heads; all per-head values stay in registers
    for h in range(heads):
        sl = slice(h * dh, (h + 1) * dh)
        # scores: batch-leading 3D dot_general, no explicit K transpose
        s = jnp.einsum("bqd,bkd->bqk", qp3[:, :, sl], kp3[:, :, sl],
                       preferred_element_type=f32)                         # (b, lq, lk)
        if masked:
            s = jnp.where(mask_bool, f32(-1e18), s)                        # masked_fill
        s = s - jnp.max(s, axis=-1, keepdims=True)
        p = jnp.exp(s)
        p = p * pl.reciprocal(jnp.sum(p, axis=-1, keepdims=True), approx=False)
        # (eval-mode dropout == identity)
        ctx = jnp.einsum("bqk,bkd->bqd", p, vp3[:, :, sl],
                         preferred_element_type=f32)                       # (b, lq, dh)
        # fold head merge + final projection: o += ctx_h @ wo[h*dh:(h+1)*dh, :]
        acc = acc + jnp.dot(ctx.reshape(b * lq, dh), wo[sl, :],
                            preferred_element_type=f32)

    o_ref[...] = acc + bo_ref[...]                                         # single store


# ----------------------------- wrapper ---------------------------------------

@functools.lru_cache(maxsize=None)
def _build_mha(mode, masked, b, lq, lk, d, heads):
    """Build (and cache) a jitted runner for one static configuration."""
    dh = d // heads
    kernel = functools.partial(_mha_kernel, mode=mode, masked=masked,
                               b=b, lq=lq, lk=lk, d=d, heads=heads, dh=dh)

    rq, rk = b * lq, b * lk
    if mode == "qkv":
        proj_flops = 2 * rq * d * 3 * d
        in_rows = rq
    elif mode == "kv":
        proj_flops = 2 * rq * d * d + 2 * rk * d * 2 * d
        in_rows = rq + rk
    else:
        proj_flops = 2 * rq * d * d + 4 * rk * d * d
        in_rows = rq + 2 * rk
    flops = proj_flops + 4 * b * heads * lq * lk * dh + 2 * rq * d * d
    bytes_accessed = (4 * (in_rows * d + rq * d + 4 * d * d + 4 * d)
                      + (b * lq * lk if masked else 0))
    cost = pl.CostEstimate(flops=int(flops),
                           transcendentals=int(b * heads * lq * lk),
                           bytes_accessed=int(bytes_accessed))

    call = pl.pallas_call(
        kernel,
        out_shape=jax.ShapeDtypeStruct((rq, d), jnp.float32),
        cost_estimate=cost,
    )

    def run(fparams, query, key, value, mask):
        inputs = [query.reshape(rq, d)]                 # free reshape (contiguous)
        if mode != "qkv":
            inputs.append(key.reshape(rk, d))
        if mode == "sep":
            inputs.append(value.reshape(rk, d))
        if masked:
            inputs.append(mask.astype(jnp.int8))        # 4x smaller DMA than int32
        if mode == "qkv":
            inputs += [fparams["w_qkv"], fparams["b_qkv"]]
        elif mode == "kv":
            inputs += [fparams["w_q"], fparams["b_q"],
                       fparams["w_kv"], fparams["b_kv"]]
        else:
            inputs += [fparams["w_q"], fparams["b_q"],
                       fparams["w_k"], fparams["b_k"],
                       fparams["w_v"], fparams["b_v"]]
        inputs += [fparams["wo"], fparams["bo"]]
        return call(*inputs).reshape(b, lq, d)

    return jax.jit(run)


def prepare_params(params, heads=HEADS):
    """One-time prep: fold 1/sqrt(d_head) scale + bias reshapes, fuse QKV/KV weights."""
    d = params["wq"].shape[0]
    dh = d // heads
    scale = jnp.float32(1.0 / math.sqrt(dh))
    wq = params["wq"] * scale
    bq = (params["bq"] * scale).reshape(1, d)
    wk, bk = params["wk"], params["bk"].reshape(1, d)
    wv, bv = params["wv"], params["bv"].reshape(1, d)
    return dict(
        w_q=wq, b_q=bq, w_k=wk, b_k=bk, w_v=wv, b_v=bv,
        w_kv=jnp.concatenate([wk, wv], axis=1),
        b_kv=jnp.concatenate([bk, bv], axis=1),
        w_qkv=jnp.concatenate([wq, wk, wv], axis=1),
        b_qkv=jnp.concatenate([bq, bk, bv], axis=1),
        wo=params["wo"], bo=params["bo"].reshape(1, d),
    )


def mha_forward(fparams, query, key, value, mask=None, heads=HEADS):
    """Pallas implementation of MultiHeadAttentionWithMetrics.forward (eval, no cache)."""
    b, lq, d = query.shape
    lk = key.shape[1]
    assert value.shape[1] == lk, "key/value sequence lengths must match"
    assert d % heads == 0
    if mask is not None and mask.ndim == 4:
        # upstream nmt code sometimes passes (B, 1, Lq, Lk)
        mask = mask.reshape(mask.shape[0], mask.shape[-2], mask.shape[-1])

    # static fusion decision from Python object identity (self-attn / shared KV)
    if (query is key) and (key is value):
        mode = "qkv"
    elif key is value:
        mode = "kv"
    else:
        mode = "sep"

    runner = _build_mha(mode, mask is not None, b, lq, lk, d, heads)
    return runner(fparams, query, key, value, mask)


# ----------------------------- reference (plain JAX) -------------------------

def mha_reference(params, query, key, value, mask=None):
    b, lq, d = query.shape
    lk = key.shape[1]
    h, dh = HEADS, d // HEADS
    qp = query @ params["wq"] + params["bq"]
    kp = key @ params["wk"] + params["bk"]
    vp = value @ params["wv"] + params["bv"]
    qh = qp.reshape(b, lq, h, dh).transpose(0, 2, 1, 3)
    kh = kp.reshape(b, lk, h, dh).transpose(0, 2, 1, 3)
    vh = vp.reshape(b, lk, h, dh).transpose(0, 2, 1, 3)
    s = jnp.einsum("bhqd,bhkd->bhqk", qh, kh) / np.sqrt(dh)
    if mask is not None:
        s = jnp.where(mask[:, None, :, :], -1e18, s)
    p = jax.nn.softmax(s, axis=3)
    ctx = jnp.einsum("bhqk,bhkd->bhqd", p, vh)
    ctx = ctx.transpose(0, 2, 1, 3).reshape(b, lq, d)
    return ctx @ params["wo"] + params["bo"]


# ----------------------------- params ----------------------------------------

def init_params(key):
    """Deterministic init matching nn.Linear shapes (weights stored pre-transposed: (in, out))."""
    ks = jax.random.split(key, 8)
    bound = 1.0 / math.sqrt(D_MODEL)

    def w(k):  # torch weight is (out, in); we store its transpose (in, out)
        return jax.random.uniform(k, (D_MODEL, D_MODEL), jnp.float32, -bound, bound)

    def bvec(k):
        return jax.random.uniform(k, (D_MODEL,), jnp.float32, -bound, bound)

    return dict(
        wq=w(ks[0]), bq=bvec(ks[1]),
        wk=w(ks[2]), bk=bvec(ks[3]),
        wv=w(ks[4]), bv=bvec(ks[5]),
        wo=w(ks[6]), bo=bvec(ks[7]),
    )


# ----------------------------- main -------------------------------------------

if __name__ == "__main__":
    B, LQ, LKV = 2, 8, 16

    root = jax.random.PRNGKey(0)
    k_par, k_x, k_q, k_mem, k_k, k_v = jax.random.split(root, 6)

    params = init_params(k_par)
    fused = prepare_params(params)          # fold scale / fuse weights ONCE

    # 1) self-attention (query is key is value) with a causal mask -> fused QKV path
    x = jax.random.normal(k_x, (B, LQ, D_MODEL), jnp.float32)
    causal = jnp.triu(jnp.ones((LQ, LQ), dtype=bool), k=1)[None].repeat(B, axis=0)
    out1 = jax.block_until_ready(mha_forward(fused, x, x, x, causal))
    ref1 = mha_reference(params, x, x, x, causal)
    np.testing.assert_allclose(np.asarray(out1), np.asarray(ref1), rtol=1e-5, atol=1e-5)

    # 2) memory-attention style (key is value, no mask, Lk != Lq) -> fused KV path
    q = jax.random.normal(k_q, (B, LQ, D_MODEL), jnp.float32)
    mem = jax.random.normal(k_mem, (B, LKV, D_MODEL), jnp.float32)
    out2 = jax.block_until_ready(mha_forward(fused, q, mem, mem))
    ref2 = mha_reference(params, q, mem, mem, None)
    np.testing.assert_allclose(np.asarray(out2), np.asarray(ref2), rtol=1e-5, atol=1e-5)

    # 3) fully distinct q/k/v with a (B, 1, Lq, Lk) boolean mask -> general path
    k_in = jax.random.normal(k_k, (B, LQ, D_MODEL), jnp.float32)
    v_in = jax.random.normal(k_v, (B, LQ, D_MODEL), jnp.float32)
    mask4 = jnp.triu(jnp.ones((LQ, LQ), dtype=bool), k=1)[None, None].repeat(B, axis=0)
    out3 = jax.block_until_ready(mha_forward(fused, q, k_in, v_in, mask4))
    ref3 = mha_reference(params, q, k_in, v_in, mask4.reshape(B, LQ, LQ))
    np.testing.assert_allclose(np.asarray(out3), np.asarray(ref3), rtol=1e-5, atol=1e-5)

    print("KERNEL_OK")
</pallas_src>

<mosaic_0001>
module attributes {stable_mosaic.version = 11 : i64} {
  func.func @_mha_kernel(%arg0: memref<16x32xf32, #tpu.memory_space<vmem>>, %arg1: memref<2x8x8xi8, #tpu.memory_space<vmem>>, %arg2: memref<32x96xf32, #tpu.memory_space<vmem>>, %arg3: memref<1x96xf32, #tpu.memory_space<vmem>>, %arg4: memref<32x32xf32, #tpu.memory_space<vmem>>, %arg5: memref<1x32xf32, #tpu.memory_space<vmem>>, %arg6: memref<16x32xf32, #tpu.memory_space<vmem>>) attributes {dimension_semantics = [], scalar_prefetch = 0 : i64, scratch_operands = 0 : i64, tpu.core_type = #tpu.core_type<tc>} {
    %c0 = arith.constant 0 : index
    %c0_0 = arith.constant 0 : index
    %0 = vector.load %arg0[%c0, %c0_0] : memref<16x32xf32, #tpu.memory_space<vmem>>, vector<16x32xf32>
    %c0_1 = arith.constant 0 : index
    %c0_2 = arith.constant 0 : index
    %1 = vector.load %arg2[%c0_1, %c0_2] : memref<32x96xf32, #tpu.memory_space<vmem>>, vector<32x96xf32>
    %cst = arith.constant dense<0.000000e+00> : vector<16x96xf32>
    %2 = tpu.matmul %0, %1, %cst {dimension_numbers = #tpu.dot_dimension_numbers<[1], [0], [0], [1], [0, 0, 1, 1], [], []>} : vector<16x32xf32>, vector<32x96xf32>, vector<16x96xf32> -> vector<16x96xf32>
    %c0_3 = arith.constant 0 : index
    %c0_4 = arith.constant 0 : index
    %3 = vector.load %arg3[%c0_3, %c0_4] : memref<1x96xf32, #tpu.memory_space<vmem>>, vector<1x96xf32>
    %4 = vector.broadcast %3 : vector<1x96xf32> to vector<16x96xf32>
    %5 = arith.addf %2, %4 : vector<16x96xf32>
    %6 = vector.extract_strided_slice %5 {offsets = [0, 0], sizes = [16, 32], strides = [1, 1]} : vector<16x96xf32> to vector<16x32xf32>
    %7 = vector.extract_strided_slice %5 {offsets = [0, 32], sizes = [16, 32], strides = [1, 1]} : vector<16x96xf32> to vector<16x32xf32>
    %8 = vector.extract_strided_slice %5 {offsets = [0, 64], sizes = [16, 32], strides = [1, 1]} : vector<16x96xf32> to vector<16x32xf32>
    %9 = vector.shape_cast %6 : vector<16x32xf32> to vector<2x8x32xf32>
    %10 = vector.shape_cast %7 : vector<16x32xf32> to vector<2x8x32xf32>
    %11 = vector.shape_cast %8 : vector<16x32xf32> to vector<2x8x32xf32>
    %c0_5 = arith.constant 0 : index
    %c0_6 = arith.constant 0 : index
    %c0_7 = arith.constant 0 : index
    %12 = vector.load %arg1[%c0_5, %c0_6, %c0_7] : memref<2x8x8xi8, #tpu.memory_space<vmem>>, vector<2x8x8xi8>
    %13 = arith.extsi %12 : vector<2x8x8xi8> to vector<2x8x8xi32>
    %c0_i32 = arith.constant 0 : i32
    %14 = vector.broadcast %c0_i32 : i32 to vector<2x8x8xi32>
    %15 = arith.cmpi ne, %13, %14 : vector<2x8x8xi32>
    %c0_8 = arith.constant 0 : index
    %c0_9 = arith.constant 0 : index
    %16 = vector.load %arg4[%c0_8, %c0_9] : memref<32x32xf32, #tpu.memory_space<vmem>>, vector<32x32xf32>
    %cst_10 = arith.constant 0.000000e+00 : f32
    %17 = vector.broadcast %cst_10 : f32 to vector<16x32xf32>
    %18 = vector.extract_strided_slice %9 {offsets = [0, 0, 0], sizes = [2, 8, 8], strides = [1, 1, 1]} : vector<2x8x32xf32> to vector<2x8x8xf32>
    %19 = vector.extract_strided_slice %10 {offsets = [0, 0, 0], sizes = [2, 8, 8], strides = [1, 1, 1]} : vector<2x8x32xf32> to vector<2x8x8xf32>
    "tpu.trace_start"() <{level = 10 : i32, message = "bqd,bkd->bqk"}> : () -> ()
    %cst_11 = arith.constant dense<0.000000e+00> : vector<2x8x8xf32>
    %20 = tpu.matmul %18, %19, %cst_11 {dimension_numbers = #tpu.dot_dimension_numbers<[2], [2], [1], [1], [0, 0, 0, 1, 1, 1], [0], [0]>} : vector<2x8x8xf32>, vector<2x8x8xf32>, vector<2x8x8xf32> -> vector<2x8x8xf32>
    %cst_12 = arith.constant -9.99999984E+17 : f32
    "tpu.trace_stop"() : () -> ()
    %21 = vector.broadcast %cst_12 : f32 to vector<2x8x8xf32>
    %22 = arith.select %15, %21, %20 : vector<2x8x8xi1>, vector<2x8x8xf32>
    %cst_13 = arith.constant dense<0xFF800000> : vector<2x8xf32>
    %23 = vector.multi_reduction <maximumf>, %22, %cst_13 [2] : vector<2x8x8xf32> to vector<2x8xf32>
    %24 = vector.shape_cast %23 : vector<2x8xf32> to vector<2x8x1xf32>
    %25 = vector.broadcast %24 : vector<2x8x1xf32> to vector<2x8x8xf32>
    %26 = arith.subf %22, %25 : vector<2x8x8xf32>
    %27 = math.exp %26 : vector<2x8x8xf32>
    %cst_14 = arith.constant dense<0.000000e+00> : vector<2x8xf32>
    %28 = vector.multi_reduction <add>, %27, %cst_14 [2] : vector<2x8x8xf32> to vector<2x8xf32>
    %29 = vector.shape_cast %28 : vector<2x8xf32> to vector<2x8x1xf32>
    %30 = tpu.reciprocal %29 : vector<2x8x1xf32> -> vector<2x8x1xf32>
    %31 = vector.broadcast %30 : vector<2x8x1xf32> to vector<2x8x8xf32>
    %32 = arith.mulf %27, %31 : vector<2x8x8xf32>
    %33 = vector.extract_strided_slice %11 {offsets = [0, 0, 0], sizes = [2, 8, 8], strides = [1, 1, 1]} : vector<2x8x32xf32> to vector<2x8x8xf32>
    "tpu.trace_start"() <{level = 10 : i32, message = "bqk,bkd->bqd"}> : () -> ()
    %cst_15 = arith.constant dense<0.000000e+00> : vector<2x8x8xf32>
    %34 = tpu.matmul %32, %33, %cst_15 {dimension_numbers = #tpu.dot_dimension_numbers<[2], [1], [1], [2], [0, 0, 0, 1, 1, 2], [0], [0]>} : vector<2x8x8xf32>, vector<2x8x8xf32>, vector<2x8x8xf32> -> vector<2x8x8xf32>
    "tpu.trace_stop"() : () -> ()
    %35 = vector.shape_cast %34 : vector<2x8x8xf32> to vector<16x8xf32>
    %36 = vector.extract_strided_slice %16 {offsets = [0, 0], sizes = [8, 32], strides = [1, 1]} : vector<32x32xf32> to vector<8x32xf32>
    %cst_16 = arith.constant dense<0.000000e+00> : vector<16x32xf32>
    %37 = tpu.matmul %35, %36, %cst_16 {dimension_numbers = #tpu.dot_dimension_numbers<[1], [0], [0], [1], [0, 0, 1, 1], [], []>} : vector<16x8xf32>, vector<8x32xf32>, vector<16x32xf32> -> vector<16x32xf32>
    %38 = arith.addf %17, %37 : vector<16x32xf32>
    %39 = vector.extract_strided_slice %9 {offsets = [0, 0, 8], sizes = [2, 8, 8], strides = [1, 1, 1]} : vector<2x8x32xf32> to vector<2x8x8xf32>
    %40 = vector.extract_strided_slice %10 {offsets = [0, 0, 8], sizes = [2, 8, 8], strides = [1, 1, 1]} : vector<2x8x32xf32> to vector<2x8x8xf32>
    "tpu.trace_start"() <{level = 10 : i32, message = "bqd,bkd->bqk"}> : () -> ()
    %cst_17 = arith.constant dense<0.000000e+00> : vector<2x8x8xf32>
    %41 = tpu.matmul %39, %40, %cst_17 {dimension_numbers = #tpu.dot_dimension_numbers<[2], [2], [1], [1], [0, 0, 0, 1, 1, 1], [0], [0]>} : vector<2x8x8xf32>, vector<2x8x8xf32>, vector<2x8x8xf32> -> vector<2x8x8xf32>
    %cst_18 = arith.constant -9.99999984E+17 : f32
    "tpu.trace_stop"() : () -> ()
    %42 = vector.broadcast %cst_18 : f32 to vector<2x8x8xf32>
    %43 = arith.select %15, %42, %41 : vector<2x8x8xi1>, vector<2x8x8xf32>
    %cst_19 = arith.constant dense<0xFF800000> : vector<2x8xf32>
    %44 = vector.multi_reduction <maximumf>, %43, %cst_19 [2] : vector<2x8x8xf32> to vector<2x8xf32>
    %45 = vector.shape_cast %44 : vector<2x8xf32> to vector<2x8x1xf32>
    %46 = vector.broadcast %45 : vector<2x8x1xf32> to vector<2x8x8xf32>
    %47 = arith.subf %43, %46 : vector<2x8x8xf32>
    %48 = math.exp %47 : vector<2x8x8xf32>
    %cst_20 = arith.constant dense<0.000000e+00> : vector<2x8xf32>
    %49 = vector.multi_reduction <add>, %48, %cst_20 [2] : vector<2x8x8xf32> to vector<2x8xf32>
    %50 = vector.shape_cast %49 : vector<2x8xf32> to vector<2x8x1xf32>
    %51 = tpu.reciprocal %50 : vector<2x8x1xf32> -> vector<2x8x1xf32>
    %52 = vector.broadcast %51 : vector<2x8x1xf32> to vector<2x8x8xf32>
    %53 = arith.mulf %48, %52 : vector<2x8x8xf32>
    %54 = vector.extract_strided_slice %11 {offsets = [0, 0, 8], sizes = [2, 8, 8], strides = [1, 1, 1]} : vector<2x8x32xf32> to vector<2x8x8xf32>
    "tpu.trace_start"() <{level = 10 : i32, message = "bqk,bkd->bqd"}> : () -> ()
    %cst_21 = arith.constant dense<0.000000e+00> : vector<2x8x8xf32>
    %55 = tpu.matmul %53, %54, %cst_21 {dimension_numbers = #tpu.dot_dimension_numbers<[2], [1], [1], [2], [0, 0, 0, 1, 1, 2], [0], [0]>} : vector<2x8x8xf32>, vector<2x8x8xf32>, vector<2x8x8xf32> -> vector<2x8x8xf32>
    "tpu.trace_stop"() : () -> ()
    %56 = vector.shape_cast %55 : vector<2x8x8xf32> to vector<16x8xf32>
    %57 = vector.extract_strided_slice %16 {offsets = [8, 0], sizes = [8, 32], strides = [1, 1]} : vector<32x32xf32> to vector<8x32xf32>
    %cst_22 = arith.constant dense<0.000000e+00> : vector<16x32xf32>
    %58 = tpu.matmul %56, %57, %cst_22 {dimension_numbers = #tpu.dot_dimension_numbers<[1], [0], [0], [1], [0, 0, 1, 1], [], []>} : vector<16x8xf32>, vector<8x32xf32>, vector<16x32xf32> -> vector<16x32xf32>
    %59 = arith.addf %38, %58 : vector<16x32xf32>
    %60 = vector.extract_strided_slice %9 {offsets = [0, 0, 16], sizes = [2, 8, 8], strides = [1, 1, 1]} : vector<2x8x32xf32> to vector<2x8x8xf32>
    %61 = vector.extract_strided_slice %10 {offsets = [0, 0, 16], sizes = [2, 8, 8], strides = [1, 1, 1]} : vector<2x8x32xf32> to vector<2x8x8xf32>
    "tpu.trace_start"() <{level = 10 : i32, message = "bqd,bkd->bqk"}> : () -> ()
    %cst_23 = arith.constant dense<0.000000e+00> : vector<2x8x8xf32>
    %62 = tpu.matmul %60, %61, %cst_23 {dimension_numbers = #tpu.dot_dimension_numbers<[2], [2], [1], [1], [0, 0, 0, 1, 1, 1], [0], [0]>} : vector<2x8x8xf32>, vector<2x8x8xf32>, vector<2x8x8xf32> -> vector<2x8x8xf32>
    %cst_24 = arith.constant -9.99999984E+17 : f32
    "tpu.trace_stop"() : () -> ()
    %63 = vector.broadcast %cst_24 : f32 to vector<2x8x8xf32>
    %64 = arith.select %15, %63, %62 : vector<2x8x8xi1>, vector<2x8x8xf32>
    %cst_25 = arith.constant dense<0xFF800000> : vector<2x8xf32>
    %65 = vector.multi_reduction <maximumf>, %64, %cst_25 [2] : vector<2x8x8xf32> to vector<2x8xf32>
    %66 = vector.shape_cast %65 : vector<2x8xf32> to vector<2x8x1xf32>
    %67 = vector.broadcast %66 : vector<2x8x1xf32> to vector<2x8x8xf32>
    %68 = arith.subf %64, %67 : vector<2x8x8xf32>
    %69 = math.exp %68 : vector<2x8x8xf32>
    %cst_26 = arith.constant dense<0.000000e+00> : vector<2x8xf32>
    %70 = vector.multi_reduction <add>, %69, %cst_26 [2] : vector<2x8x8xf32> to vector<2x8xf32>
    %71 = vector.shape_cast %70 : vector<2x8xf32> to vector<2x8x1xf32>
    %72 = tpu.reciprocal %71 : vector<2x8x1xf32> -> vector<2x8x1xf32>
    %73 = vector.broadcast %72 : vector<2x8x1xf32> to vector<2x8x8xf32>
    %74 = arith.mulf %69, %73 : vector<2x8x8xf32>
    %75 = vector.extract_strided_slice %11 {offsets = [0, 0, 16], sizes = [2, 8, 8], strides = [1, 1, 1]} : vector<2x8x32xf32> to vector<2x8x8xf32>
    "tpu.trace_start"() <{level = 10 : i32, message = "bqk,bkd->bqd"}> : () -> ()
    %cst_27 = arith.constant dense<0.000000e+00> : vector<2x8x8xf32>
    %76 = tpu.matmul %74, %75, %cst_27 {dimension_numbers = #tpu.dot_dimension_numbers<[2], [1], [1], [2], [0, 0, 0, 1, 1, 2], [0], [0]>} : vector<2x8x8xf32>, vector<2x8x8xf32>, vector<2x8x8xf32> -> vector<2x8x8xf32>
    "tpu.trace_stop"() : () -> ()
    %77 = vector.shape_cast %76 : vector<2x8x8xf32> to vector<16x8xf32>
    %78 = vector.extract_strided_slice %16 {offsets = [16, 0], sizes = [8, 32], strides = [1, 1]} : vector<32x32xf32> to vector<8x32xf32>
    %cst_28 = arith.constant dense<0.000000e+00> : vector<16x32xf32>
    %79 = tpu.matmul %77, %78, %cst_28 {dimension_numbers = #tpu.dot_dimension_numbers<[1], [0], [0], [1], [0, 0, 1, 1], [], []>} : vector<16x8xf32>, vector<8x32xf32>, vector<16x32xf32> -> vector<16x32xf32>
    %80 = arith.addf %59, %79 : vector<16x32xf32>
    %81 = vector.extract_strided_slice %9 {offsets = [0, 0, 24], sizes = [2, 8, 8], strides = [1, 1, 1]} : vector<2x8x32xf32> to vector<2x8x8xf32>
    %82 = vector.extract_strided_slice %10 {offsets = [0, 0, 24], sizes = [2, 8, 8], strides = [1, 1, 1]} : vector<2x8x32xf32> to vector<2x8x8xf32>
    "tpu.trace_start"() <{level = 10 : i32, message = "bqd,bkd->bqk"}> : () -> ()
    %cst_29 = arith.constant dense<0.000000e+00> : vector<2x8x8xf32>
    %83 = tpu.matmul %81, %82, %cst_29 {dimension_numbers = #tpu.dot_dimension_numbers<[2], [2], [1], [1], [0, 0, 0, 1, 1, 1], [0], [0]>} : vector<2x8x8xf32>, vector<2x8x8xf32>, vector<2x8x8xf32> -> vector<2x8x8xf32>
    %cst_30 = arith.constant -9.99999984E+17 : f32
    "tpu.trace_stop"() : () -> ()
    %84 = vector.broadcast %cst_30 : f32 to vector<2x8x8xf32>
    %85 = arith.select %15, %84, %83 : vector<2x8x8xi1>, vector<2x8x8xf32>
    %cst_31 = arith.constant dense<0xFF800000> : vector<2x8xf32>
    %86 = vector.multi_reduction <maximumf>, %85, %cst_31 [2] : vector<2x8x8xf32> to vector<2x8xf32>
    %87 = vector.shape_cast %86 : vector<2x8xf32> to vector<2x8x1xf32>
    %88 = vector.broadcast %87 : vector<2x8x1xf32> to vector<2x8x8xf32>
    %89 = arith.subf %85, %88 : vector<2x8x8xf32>
    %90 = math.exp %89 : vector<2x8x8xf32>
    %cst_32 = arith.constant dense<0.000000e+00> : vector<2x8xf32>
    %91 = vector.multi_reduction <add>, %90, %cst_32 [2] : vector<2x8x8xf32> to vector<2x8xf32>
    %92 = vector.shape_cast %91 : vector<2x8xf32> to vector<2x8x1xf32>
    %93 = tpu.reciprocal %92 : vector<2x8x1xf32> -> vector<2x8x1xf32>
    %94 = vector.broadcast %93 : vector<2x8x1xf32> to vector<2x8x8xf32>
    %95 = arith.mulf %90, %94 : vector<2x8x8xf32>
    %96 = vector.extract_strided_slice %11 {offsets = [0, 0, 24], sizes = [2, 8, 8], strides = [1, 1, 1]} : vector<2x8x32xf32> to vector<2x8x8xf32>
    "tpu.trace_start"() <{level = 10 : i32, message = "bqk,bkd->bqd"}> : () -> ()
    %cst_33 = arith.constant dense<0.000000e+00> : vector<2x8x8xf32>
    %97 = tpu.matmul %95, %96, %cst_33 {dimension_numbers = #tpu.dot_dimension_numbers<[2], [1], [1], [2], [0, 0, 0, 1, 1, 2], [0], [0]>} : vector<2x8x8xf32>, vector<2x8x8xf32>, vector<2x8x8xf32> -> vector<2x8x8xf32>
    "tpu.trace_stop"() : () -> ()
    %98 = vector.shape_cast %97 : vector<2x8x8xf32> to vector<16x8xf32>
    %99 = vector.extract_strided_slice %16 {offsets = [24, 0], sizes = [8, 32], strides = [1, 1]} : vector<32x32xf32> to vector<8x32xf32>
    %cst_34 = arith.constant dense<0.000000e+00> : vector<16x32xf32>
    %100 = tpu.matmul %98, %99, %cst_34 {dimension_numbers = #tpu.dot_dimension_numbers<[1], [0], [0], [1], [0, 0, 1, 1], [], []>} : vector<16x8xf32>, vector<8x32xf32>, vector<16x32xf32> -> vector<16x32xf32>
    %101 = arith.addf %80, %100 : vector<16x32xf32>
    %c0_35 = arith.constant 0 : index
    %c0_36 = arith.constant 0 : index
    %102 = vector.load %arg5[%c0_35, %c0_36] : memref<1x32xf32, #tpu.memory_space<vmem>>, vector<1x32xf32>
    %103 = vector.broadcast %102 : vector<1x32xf32> to vector<16x32xf32>
    %104 = arith.addf %101, %103 : vector<16x32xf32>
    %c0_37 = arith.constant 0 : index
    %c0_38 = arith.constant 0 : index
    %105 = vector.load %arg6[%c0_37, %c0_38] : memref<16x32xf32, #tpu.memory_space<vmem>>, vector<16x32xf32>
    tpu.vector_store %arg6[%c0_37, %c0_38], %104 {strides = array<i32>} : memref<16x32xf32, #tpu.memory_space<vmem>>, vector<16x32xf32>,
    return
  }
}

</mosaic_0001>

<llo_original>
// kernel: run.1
$region0: #{run.1}
  #allocation0 [shape = 'u32[]', space=smem, size = 0x4, offset = 0x4, fixed_abs, tag = 'smem constant byte address 0x4 - core index']
  #allocation1 [shape = 'u32[144,128]{1,0:T(1,128)}', space=vmem, size = 0x12000, scoped, tag = 'internal scratch']
  %s0 = inlined_call_operand.vmem [shape: f32[16,32], index: 0, kind: input, shape index: {}]
  %s1 = inlined_call_operand.vmem [shape: s8[2,8,8], index: 1, kind: input, shape index: {}]
  %s2 = inlined_call_operand.hbm [shape: f32[32,96], index: 2, kind: input, shape index: {}]
  %s3 = inlined_call_operand.vmem [shape: f32[1,96], index: 3, kind: input, shape index: {}]
  %s4 = inlined_call_operand.hbm [shape: f32[32,32], index: 4, kind: input, shape index: {}]
  %s5 = inlined_call_operand.hbm [shape: f32[1,32], index: 5, kind: input, shape index: {}]
  %s6 = inlined_call_operand.hbm [shape: f32[16,32], index: 6, kind: output, shape index: {}]
  %s7 = sld [smem:[#allocation0]]
  $region46: #{run.1} parent=0
    _
  %s9 = ssub.s32 1, %s7
  %s10 = scalar_select 0, %s9, %s7
  $region1: #{run.1} parent=0
    #allocation2 [shape = 'u8[16384]{0}', space=vmem, size = 0x4000, scoped, tag = 'input window, operand 2, single buffered']
    #allocation3 [shape = 's32[1]{0}', space=sflag, size = 0x4, scoped, tag = 'scoped memory for run.1']
    #allocation4 [shape = 's32[1]{0}', space=sflag, size = 0x4, scoped, tag = 'scoped memory for run.1']
    #allocation5 [shape = 'u8[16384]{0}', space=vmem, size = 0x4000, scoped, tag = 'input window, operand 4, single buffered']
    #allocation6 [shape = 's32[1]{0}', space=sflag, size = 0x4, scoped, tag = 'scoped memory for run.1']
    #allocation7 [shape = 'u8[512]{0}', space=vmem, size = 0x400, scoped, tag = 'input window, operand 5, single buffered']
    #allocation8 [shape = 'u8[8192]{0}', space=vmem, size = 0x2000, scoped, tag = 'output window, operand 0, single buffered']
    %11 = vsyncpa [#allocation3], 0
    %12 = vsyncpa [#allocation6], 0
    %13 = vsyncpa [#allocation4], 0
    // Predicated region
    $region2: #{run.1} parent=1 // pred_check
      _
    $region3: #{run.1} parent=1 // pred_check_branch
      %15 = sbr.rel (0) target = $region5
    $region4: #{run.1} parent=1 // pred_region
      _
    $region5: #{run.1} parent=1 // pred_fallthru
      _
    // Predicated region
    $region6: #{run.1} parent=1 // pred_check
      _
    $region7: #{run.1} parent=1 // pred_check_branch
      %17 = sbr.rel (0) target = $region9
    $region8: #{run.1} parent=1 // pred_region
      _
    $region9: #{run.1} parent=1 // pred_fallthru
      _
    // Predicated region
    $region10: #{run.1} parent=1 // pred_check
      _
    $region11: #{run.1} parent=1 // pred_check_branch
      %19 = sbr.rel (0) target = $region13
    $region12: #{run.1} parent=1 // pred_region
      %s21 = ssub.s32 512, 512
      %22 = vsyncadd [#allocation3], %s21
      %s23 = sshll.u32 [#allocation2], 4
      %s24 = int_to_ptr.vmem [resolvable:$true] %s23
      %29 = dma.hbm_to_vmem [thread:$0]  %s2, 512, %s24, [#allocation3], 128, 128, 8
    $region13: #{run.1} parent=1 // pred_fallthru
      _
    // Predicated region
    $region14: #{run.1} parent=1 // pred_check
      _
    $region15: #{run.1} parent=1 // pred_check_branch
      %31 = sbr.rel (0) target = $region17
    $region16: #{run.1} parent=1 // pred_region
      _
    $region17: #{run.1} parent=1 // pred_fallthru
      _
    // Predicated region
    $region18: #{run.1} parent=1 // pred_check
      _
    $region19: #{run.1} parent=1 // pred_check_branch
      %33 = sbr.rel (0) target = $region21
    $region20: #{run.1} parent=1 // pred_region
      %s35 = ssub.s32 512, 512
      %36 = vsyncadd [#allocation6], %s35
      %s37 = sshll.u32 [#allocation5], 4
      %s38 = int_to_ptr.vmem [resolvable:$true] %s37
      %43 = dma.hbm_to_vmem [thread:$0]  %s4, 512, %s38, [#allocation6], 128, 128, 8
    $region21: #{run.1} parent=1 // pred_fallthru
      _
    // Predicated region
    $region22: #{run.1} parent=1 // pred_check
      _
    $region23: #{run.1} parent=1 // pred_check_branch
      %45 = sbr.rel (0) target = $region25
    $region24: #{run.1} parent=1 // pred_region
      %s47 = ssub.s32 16, 16
      %48 = vsyncadd [#allocation6], %s47
      %s50 = sshll.u32 [#allocation7], 4
      %s51 = int_to_ptr.vmem [resolvable:$true] %s50
      %53 = dma.hbm_to_vmem [thread:$0]  %s5, 16, %s51, [#allocation6]
    $region25: #{run.1} parent=1 // pred_fallthru
      _
    // Predicated region
    $region26: #{run.1} parent=1 // pred_check
      _
    $region27: #{run.1} parent=1 // pred_check_branch
      %55 = sbr.rel (0) target = $region29
    $region28: #{run.1} parent=1 // pred_region
      %56 = dma.done [#allocation3], 512
    $region29: #{run.1} parent=1 // pred_fallthru
      _
    // Predicated region
    $region30: #{run.1} parent=1 // pred_check
      _
    $region31: #{run.1} parent=1 // pred_check_branch
      %58 = sbr.rel (0) target = $region33
    $region32: #{run.1} parent=1 // pred_region
      %59 = dma.done [#allocation6], 512
    $region33: #{run.1} parent=1 // pred_fallthru
      _
    // Predicated region
    $region34: #{run.1} parent=1 // pred_check
      _
    $region35: #{run.1} parent=1 // pred_check_branch
      %61 = sbr.rel (0) target = $region37
    $region36: #{run.1} parent=1 // pred_region
      %62 = dma.done [#allocation6], 16
    $region37: #{run.1} parent=1 // pred_fallthru
      _
    %v63 = vld [vmem:[%s0] sm:$0xff]
    %v64 = vld [vmem:[%s0 + $0x8] sm:$0xff]
    %v65 = vld [vmem:[#allocation2] sm:$0xff]
    %v66 = vld [vmem:[#allocation2 + $0x8] sm:$0xff]
    %v67 = vld [vmem:[#allocation2 + $0x10] sm:$0xff]
    %v68 = vld [vmem:[#allocation2 + $0x18] sm:$0xff]
    %v69 = vld [vmem:[%s3] sm:$0x1]
    %v71 = vlaneseq
    %v72 = vshrl.u32 %v71, 7
    %v73 = vsub.s32 0, %v72
    %v74 = vrot.slane %v69, %v73
    %vm76 = vcmask 261120
    %v78 = vsel %vm76, %v63, 0
    %v81 = vsel %vm76, %v64, 0
    %83 = vmatprep.subr.mxu0 0.0
    %84 = vmatpush1.msra.mxu0 0.0
    %85 = vmatprep.subr.mxu0 0.0
    %86 = vmatpush1.msra.mxu0 0.0
    %87 = vmatprep.subr.mxu0 0.0
    %88 = vmatpush1.msra.mxu0 0.0
    %89 = vmatprep.subr.mxu0 0.0
    %90 = vmatpush1.msra.mxu0 0.0
    %91 = vmatprep.subr.mxu0 0.0
    %92 = vmatpush1.msra.mxu0 0.0
    %93 = vmatprep.subr.mxu0 0.0
    %94 = vmatpush1.msra.mxu0 0.0
    %95 = vmatprep.subr.mxu0 0.0
    %96 = vmatpush1.msra.mxu0 0.0
    %97 = vmatprep.subr.mxu0 0.0
    %98 = vmatpush1.msra.mxu0 0.0
    %99 = vmatprep.subr.mxu0 0.0
    %100 = vmatpush1.msra.mxu0 0.0
    %101 = vmatprep.subr.mxu0 0.0
    %102 = vmatpush1.msra.mxu0 0.0
    %103 = vmatprep.subr.mxu0 0.0
    %104 = vmatpush1.msra.mxu0 0.0
    %105 = vmatprep.subr.mxu0 0.0
    %106 = vmatpush1.msra.mxu0 0.0
    %107 = vmatprep.subr.mxu0 0.0
    %108 = vmatpush1.msra.mxu0 %v68
    %109 = vmatprep.subr.mxu0 0.0
    %110 = vmatpush1.msra.mxu0 %v67
    %111 = vmatprep.subr.mxu0 0.0
    %112 = vmatpush1.msra.mxu0 %v66
    %113 = vmatprep.subr.mxu0 0.0
    %114 = vmatpush1.msra.mxu0 %v65
    %115 = vmatprep.subr.mxu0 0.0
    %116 = vmatpush2.msra.mxu0 0.0
    %117 = vmatprep.subr.mxu0 0.0
    %118 = vmatpush2.msra.mxu0 0.0
    %119 = vmatprep.subr.mxu0 0.0
    %120 = vmatpush2.msra.mxu0 0.0
    %121 = vmatprep.subr.mxu0 0.0
    %122 = vmatpush2.msra.mxu0 0.0
    %123 = vmatprep.subr.mxu0 0.0
    %124 = vmatpush2.msra.mxu0 0.0
    %125 = vmatprep.subr.mxu0 0.0
    %126 = vmatpush2.msra.mxu0 0.0
    %127 = vmatprep.subr.mxu0 0.0
    %128 = vmatpush2.msra.mxu0 0.0
    %129 = vmatprep.subr.mxu0 0.0
    %130 = vmatpush2.msra.mxu0 0.0
    %131 = vmatprep.subr.mxu0 0.0
    %132 = vmatpush2.msra.mxu0 0.0
    %133 = vmatprep.subr.mxu0 0.0
    %134 = vmatpush2.msra.mxu0 0.0
    %135 = vmatprep.subr.mxu0 0.0
    %136 = vmatpush2.msra.mxu0 0.0
    %137 = vmatprep.subr.mxu0 0.0
    %138 = vmatpush2.msra.mxu0 0.0
    %139 = vmatprep.subr.mxu0 0.0
    %140 = vmatpush2.msra.mxu0 0.0
    %141 = vmatprep.subr.mxu0 0.0
    %142 = vmatpush2.msra.mxu0 0.0
    %143 = vmatprep.subr.mxu0 0.0
    %144 = vmatpush2.msra.mxu0 0.0
    %145 = vmatprep.subr.mxu0 0.0
    %146 = vmatpush2.msra.mxu0 0.0
    %147 = vmatprep.mubr.f32.mxu0 0.0
    %148 = vmatmul.mubr.f32.gmra.mxu0 %v78
    %v149 = vpop.f32.mrf.mxu0
    %v150 = vadd.f32 %v74, %v149
    %v151 = vpop.f32.mrf.mxu0
    %152 = vmatprep.mubr.f32.mxu0 0.0
    %153 = vmatmul.mubr.f32.gmra.mxu0 %v81
    %v154 = vpop.f32.mrf.mxu0
    %v155 = vadd.f32 %v74, %v154
    %v156 = vpop.f32.mrf.mxu0
    %157 = vdwg.mxu0
    %v158 = vld [vmem:[%s1] sm:$0x3]
    %v159 = vld [vmem:[%s1 + $0x2] sm:$0x3]
    %v160 = vunpack.c.0.s8 %v158
    %v161 = vunpack.c.0.s8 %v159
    %vm162 = vcmp.ne.s32.totalorder %v160, 0
    %vm163 = vcmp.ne.s32.totalorder %v161, 0
    %v164 = vld [vmem:[#allocation5] sm:$0xff]
    %v165 = vld [vmem:[#allocation5 + $0x8] sm:$0xff]
    %v166 = vld [vmem:[#allocation5 + $0x10] sm:$0xff]
    %v167 = vld [vmem:[#allocation5 + $0x18] sm:$0xff]
    %169 = vrot.lane.b32.xlu0 %v150, 96
    %v170 = vpop.permute.xlu0 %169
    %vm171 = vcmask 64512
    %v172 = vsel %vm171, %v150, 0
    %v174 = vsel %vm171, %v170, 0
    %176 = vmatprep.subr.mxu0 0.0
    %177 = vmatpush1.xpose.msra.mxu0 0.0
    %178 = vmatprep.subr.mxu0 0.0
    %179 = vmatpush1.xpose.msra.mxu0 0.0
    %180 = vmatprep.subr.mxu0 0.0
    %181 = vmatpush1.xpose.msra.mxu0 0.0
    %182 = vmatprep.subr.mxu0 0.0
    %183 = vmatpush1.xpose.msra.mxu0 0.0
    %184 = vmatprep.subr.mxu0 0.0
    %185 = vmatpush1.xpose.msra.mxu0 0.0
    %186 = vmatprep.subr.mxu0 0.0
    %187 = vmatpush1.xpose.msra.mxu0 0.0
    %188 = vmatprep.subr.mxu0 0.0
    %189 = vmatpush1.xpose.msra.mxu0 0.0
    %190 = vmatprep.subr.mxu0 0.0
    %191 = vmatpush1.xpose.msra.mxu0 0.0
    %192 = vmatprep.subr.mxu0 0.0
    %193 = vmatpush1.xpose.msra.mxu0 0.0
    %194 = vmatprep.subr.mxu0 0.0
    %195 = vmatpush1.xpose.msra.mxu0 0.0
    %196 = vmatprep.subr.mxu0 0.0
    %197 = vmatpush1.xpose.msra.mxu0 0.0
    %198 = vmatprep.subr.mxu0 0.0
    %199 = vmatpush1.xpose.msra.mxu0 0.0
    %200 = vmatprep.subr.mxu0 0.0
    %201 = vmatpush1.xpose.msra.mxu0 0.0
    %202 = vmatprep.subr.mxu0 0.0
    %203 = vmatpush1.xpose.msra.mxu0 0.0
    %204 = vmatprep.subr.mxu0 0.0
    %205 = vmatpush1.xpose.msra.mxu0 0.0
    %206 = vmatprep.subr.mxu0 0.0
    %207 = vmatpush1.xpose.msra.mxu0 %v174
    %208 = vmatprep.subr.mxu0 0.0
    %209 = vmatpush2.xpose.msra.mxu0 0.0
    %210 = vmatprep.subr.mxu0 0.0
    %211 = vmatpush2.xpose.msra.mxu0 0.0
    %212 = vmatprep.subr.mxu0 0.0
    %213 = vmatpush2.xpose.msra.mxu0 0.0
    %214 = vmatprep.subr.mxu0 0.0
    %215 = vmatpush2.xpose.msra.mxu0 0.0
    %216 = vmatprep.subr.mxu0 0.0
    %217 = vmatpush2.xpose.msra.mxu0 0.0
    %218 = vmatprep.subr.mxu0 0.0
    %219 = vmatpush2.xpose.msra.mxu0 0.0
    %220 = vmatprep.subr.mxu0 0.0
    %221 = vmatpush2.xpose.msra.mxu0 0.0
    %222 = vmatprep.subr.mxu0 0.0
    %223 = vmatpush2.xpose.msra.mxu0 0.0
    %224 = vmatprep.subr.mxu0 0.0
    %225 = vmatpush2.xpose.msra.mxu0 0.0
    %226 = vmatprep.subr.mxu0 0.0
    %227 = vmatpush2.xpose.msra.mxu0 0.0
    %228 = vmatprep.subr.mxu0 0.0
    %229 = vmatpush2.xpose.msra.mxu0 0.0
    %230 = vmatprep.subr.mxu0 0.0
    %231 = vmatpush2.xpose.msra.mxu0 0.0
    %232 = vmatprep.subr.mxu0 0.0
    %233 = vmatpush2.xpose.msra.mxu0 0.0
    %234 = vmatprep.subr.mxu0 0.0
    %235 = vmatpush2.xpose.msra.mxu0 0.0
    %236 = vmatprep.subr.mxu0 0.0
    %237 = vmatpush2.xpose.msra.mxu0 0.0
    %238 = vmatprep.subr.mxu0 0.0
    %239 = vmatpush2.xpose.msra.mxu0 0.0
    %240 = vmatprep.mubr.f32.mxu0 0.0
    %241 = vmatmul.mubr.f32.gmra.mxu0 %v172
    %v242 = vpop.f32.mrf.mxu0
    %v243 = vadd.f32 0.0, %v242
    %v244 = vpop.f32.mrf.mxu0
    %245 = vdwg.mxu0
    %247 = vrot.lane.b32.xlu0 %v155, 96
    %v248 = vpop.permute.xlu0 %247
    %v249 = vsel %vm171, %v155, 0
    %v251 = vsel %vm171, %v248, 0
    %253 = vmatprep.subr.mxu0 0.0
    %254 = vmatpush1.xpose.msra.mxu0 0.0
    %255 = vmatprep.subr.mxu0 0.0
    %256 = vmatpush1.xpose.msra.mxu0 0.0
    %257 = vmatprep.subr.mxu0 0.0
    %258 = vmatpush1.xpose.msra.mxu0 0.0
    %259 = vmatprep.subr.mxu0 0.0
    %260 = vmatpush1.xpose.msra.mxu0 0.0
    %261 = vmatprep.subr.mxu0 0.0
    %262 = vmatpush1.xpose.msra.mxu0 0.0
    %263 = vmatprep.subr.mxu0 0.0
    %264 = vmatpush1.xpose.msra.mxu0 0.0
    %265 = vmatprep.subr.mxu0 0.0
    %266 = vmatpush1.xpose.msra.mxu0 0.0
    %267 = vmatprep.subr.mxu0 0.0
    %268 = vmatpush1.xpose.msra.mxu0 0.0
    %269 = vmatprep.subr.mxu0 0.0
    %270 = vmatpush1.xpose.msra.mxu0 0.0
    %271 = vmatprep.subr.mxu0 0.0
    %272 = vmatpush1.xpose.msra.mxu0 0.0
    %273 = vmatprep.subr.mxu0 0.0
    %274 = vmatpush1.xpose.msra.mxu0 0.0
    %275 = vmatprep.subr.mxu0 0.0
    %276 = vmatpush1.xpose.msra.mxu0 0.0
    %277 = vmatprep.subr.mxu0 0.0
    %278 = vmatpush1.xpose.msra.mxu0 0.0
    %279 = vmatprep.subr.mxu0 0.0
    %280 = vmatpush1.xpose.msra.mxu0 0.0
    %281 = vmatprep.subr.mxu0 0.0
    %282 = vmatpush1.xpose.msra.mxu0 0.0
    %283 = vmatprep.subr.mxu0 0.0
    %284 = vmatpush1.xpose.msra.mxu0 %v251
    %285 = vmatprep.subr.mxu0 0.0
    %286 = vmatpush2.xpose.msra.mxu0 0.0
    %287 = vmatprep.subr.mxu0 0.0
    %288 = vmatpush2.xpose.msra.mxu0 0.0
    %289 = vmatprep.subr.mxu0 0.0
    %290 = vmatpush2.xpose.msra.mxu0 0.0
    %291 = vmatprep.subr.mxu0 0.0
    %292 = vmatpush2.xpose.msra.mxu0 0.0
    %293 = vmatprep.subr.mxu0 0.0
    %294 = vmatpush2.xpose.msra.mxu0 0.0
    %295 = vmatprep.subr.mxu0 0.0
    %296 = vmatpush2.xpose.msra.mxu0 0.0
    %297 = vmatprep.subr.mxu0 0.0
    %298 = vmatpush2.xpose.msra.mxu0 0.0
    %299 = vmatprep.subr.mxu0 0.0
    %300 = vmatpush2.xpose.msra.mxu0 0.0
    %301 = vmatprep.subr.mxu0 0.0
    %302 = vmatpush2.xpose.msra.mxu0 0.0
    %303 = vmatprep.subr.mxu0 0.0
    %304 = vmatpush2.xpose.msra.mxu0 0.0
    %305 = vmatprep.subr.mxu0 0.0
    %306 = vmatpush2.xpose.msra.mxu0 0.0
    %307 = vmatprep.subr.mxu0 0.0
    %308 = vmatpush2.xpose.msra.mxu0 0.0
    %309 = vmatprep.subr.mxu0 0.0
    %310 = vmatpush2.xpose.msra.mxu0 0.0
    %311 = vmatprep.subr.mxu0 0.0
    %312 = vmatpush2.xpose.msra.mxu0 0.0
    %313 = vmatprep.subr.mxu0 0.0
    %314 = vmatpush2.xpose.msra.mxu0 0.0
    %315 = vmatprep.subr.mxu0 0.0
    %316 = vmatpush2.xpose.msra.mxu0 0.0
    %317 = vmatprep.mubr.f32.mxu0 0.0
    %318 = vmatmul.mubr.f32.gmra.mxu0 %v249
    %v319 = vpop.f32.mrf.mxu0
    %v320 = vadd.f32 0.0, %v319
    %v321 = vpop.f32.mrf.mxu0
    %322 = vdwg.mxu0
    %v323 = vsel %vm162, -1e+18, %v243
    %v324 = vsel %vm163, -1e+18, %v320
    %v325 = vsel %vm171, %v323, -inf
    %326 = vmax.xlane.f32.xlu0 %v325
    %v327 = vpop.xlane.xlu0 %326
    %v328 = vsel %vm171, %v324, -inf
    %329 = vmax.xlane.f32.xlu0 %v328
    %v330 = vpop.xlane.xlu0 %329
    %v331 = vsub.f32 %v323, %v327
    %v332 = vsub.f32 %v324, %v330
    %v333 = vmul.f32 %v331, 1.442695
    %v334 = vpow.pop %v333
    %v335 = vmul.f32 %v332, 1.442695
    %v336 = vpow.pop %v335
    %v337 = vsel %vm171, %v334, 0.0
    %338 = vadd.xlane.f32.xlu0 %v337
    %v339 = vpop.xlane.xlu0 %338
    %v340 = vsel %vm171, %v336, 0.0
    %341 = vadd.xlane.f32.xlu0 %v340
    %v342 = vpop.xlane.xlu0 %341
    %v343 = vrcp.pop %v339
    %v344 = vrcp.pop %v342
    %v345 = vmul.f32 %v334, %v343
    %v346 = vmul.f32 %v336, %v344
    %347 = vrot.lane.b32.xlu0 %v150, 64
    %v348 = vpop.permute.xlu0 %347
    %v351 = vsel %vm171, %v345, 0
    %353 = vmatprep.subr.mxu0 0.0
    %354 = vmatpush1.msra.mxu0 0.0
    %355 = vmatprep.subr.mxu0 0.0
    %356 = vmatpush1.msra.mxu0 0.0
    %357 = vmatprep.subr.mxu0 0.0
    %358 = vmatpush1.msra.mxu0 0.0
    %359 = vmatprep.subr.mxu0 0.0
    %360 = vmatpush1.msra.mxu0 0.0
    %361 = vmatprep.subr.mxu0 0.0
    %362 = vmatpush1.msra.mxu0 0.0
    %363 = vmatprep.subr.mxu0 0.0
    %364 = vmatpush1.msra.mxu0 0.0
    %365 = vmatprep.subr.mxu0 0.0
    %366 = vmatpush1.msra.mxu0 0.0
    %367 = vmatprep.subr.mxu0 0.0
    %368 = vmatpush1.msra.mxu0 0.0
    %369 = vmatprep.subr.mxu0 0.0
    %370 = vmatpush1.msra.mxu0 0.0
    %371 = vmatprep.subr.mxu0 0.0
    %372 = vmatpush1.msra.mxu0 0.0
    %373 = vmatprep.subr.mxu0 0.0
    %374 = vmatpush1.msra.mxu0 0.0
    %375 = vmatprep.subr.mxu0 0.0
    %376 = vmatpush1.msra.mxu0 0.0
    %377 = vmatprep.subr.mxu0 0.0
    %378 = vmatpush1.msra.mxu0 0.0
    %379 = vmatprep.subr.mxu0 0.0
    %380 = vmatpush1.msra.mxu0 0.0
    %381 = vmatprep.subr.mxu0 0.0
    %382 = vmatpush1.msra.mxu0 0.0
    %383 = vmatprep.subr.mxu0 0.0
    %384 = vmatpush1.msra.mxu0 %v348
    %385 = vmatprep.subr.mxu0 0.0
    %386 = vmatpush2.msra.mxu0 0.0
    %387 = vmatprep.subr.mxu0 0.0
    %388 = vmatpush2.msra.mxu0 0.0
    %389 = vmatprep.subr.mxu0 0.0
    %390 = vmatpush2.msra.mxu0 0.0
    %391 = vmatprep.subr.mxu0 0.0
    %392 = vmatpush2.msra.mxu0 0.0
    %393 = vmatprep.subr.mxu0 0.0
    %394 = vmatpush2.msra.mxu0 0.0
    %395 = vmatprep.subr.mxu0 0.0
    %396 = vmatpush2.msra.mxu0 0.0
    %397 = vmatprep.subr.mxu0 0.0
    %398 = vmatpush2.msra.mxu0 0.0
    %399 = vmatprep.subr.mxu0 0.0
    %400 = vmatpush2.msra.mxu0 0.0
    %401 = vmatprep.subr.mxu0 0.0
    %402 = vmatpush2.msra.mxu0 0.0
    %403 = vmatprep.subr.mxu0 0.0
    %404 = vmatpush2.msra.mxu0 0.0
    %405 = vmatprep.subr.mxu0 0.0
    %406 = vmatpush2.msra.mxu0 0.0
    %407 = vmatprep.subr.mxu0 0.0
    %408 = vmatpush2.msra.mxu0 0.0
    %409 = vmatprep.subr.mxu0 0.0
    %410 = vmatpush2.msra.mxu0 0.0
    %411 = vmatprep.subr.mxu0 0.0
    %412 = vmatpush2.msra.mxu0 0.0
    %413 = vmatprep.subr.mxu0 0.0
    %414 = vmatpush2.msra.mxu0 0.0
    %415 = vmatprep.subr.mxu0 0.0
    %416 = vmatpush2.msra.mxu0 0.0
    %417 = vmatprep.mubr.f32.mxu0 0.0
    %418 = vmatmul.mubr.f32.gmra.mxu0 %v351
    %v419 = vpop.f32.mrf.mxu0
    %v420 = vadd.f32 0.0, %v419
    %v421 = vpop.f32.mrf.mxu0
    %422 = vdwg.mxu0
    %423 = vrot.lane.b32.xlu0 %v155, 64
    %v424 = vpop.permute.xlu0 %423
    %v427 = vsel %vm171, %v346, 0
    %429 = vmatprep.subr.mxu0 0.0
    %430 = vmatpush1.msra.mxu0 0.0
    %431 = vmatprep.subr.mxu0 0.0
    %432 = vmatpush1.msra.mxu0 0.0
    %433 = vmatprep.subr.mxu0 0.0
    %434 = vmatpush1.msra.mxu0 0.0
    %435 = vmatprep.subr.mxu0 0.0
    %436 = vmatpush1.msra.mxu0 0.0
    %437 = vmatprep.subr.mxu0 0.0
    %438 = vmatpush1.msra.mxu0 0.0
    %439 = vmatprep.subr.mxu0 0.0
    %440 = vmatpush1.msra.mxu0 0.0
    %441 = vmatprep.subr.mxu0 0.0
    %442 = vmatpush1.msra.mxu0 0.0
    %443 = vmatprep.subr.mxu0 0.0
    %444 = vmatpush1.msra.mxu0 0.0
    %445 = vmatprep.subr.mxu0 0.0
    %446 = vmatpush1.msra.mxu0 0.0
    %447 = vmatprep.subr.mxu0 0.0
    %448 = vmatpush1.msra.mxu0 0.0
    %449 = vmatprep.subr.mxu0 0.0
    %450 = vmatpush1.msra.mxu0 0.0
    %451 = vmatprep.subr.mxu0 0.0
    %452 = vmatpush1.msra.mxu0 0.0
    %453 = vmatprep.subr.mxu0 0.0
    %454 = vmatpush1.msra.mxu0 0.0
    %455 = vmatprep.subr.mxu0 0.0
    %456 = vmatpush1.msra.mxu0 0.0
    %457 = vmatprep.subr.mxu0 0.0
    %458 = vmatpush1.msra.mxu0 0.0
    %459 = vmatprep.subr.mxu0 0.0
    %460 = vmatpush1.msra.mxu0 %v424
    %461 = vmatprep.subr.mxu0 0.0
    %462 = vmatpush2.msra.mxu0 0.0
    %463 = vmatprep.subr.mxu0 0.0
    %464 = vmatpush2.msra.mxu0 0.0
    %465 = vmatprep.subr.mxu0 0.0
    %466 = vmatpush2.msra.mxu0 0.0
    %467 = vmatprep.subr.mxu0 0.0
    %468 = vmatpush2.msra.mxu0 0.0
    %469 = vmatprep.subr.mxu0 0.0
    %470 = vmatpush2.msra.mxu0 0.0
    %471 = vmatprep.subr.mxu0 0.0
    %472 = vmatpush2.msra.mxu0 0.0
    %473 = vmatprep.subr.mxu0 0.0
    %474 = vmatpush2.msra.mxu0 0.0
    %475 = vmatprep.subr.mxu0 0.0
    %476 = vmatpush2.msra.mxu0 0.0
    %477 = vmatprep.subr.mxu0 0.0
    %478 = vmatpush2.msra.mxu0 0.0
    %479 = vmatprep.subr.mxu0 0.0
    %480 = vmatpush2.msra.mxu0 0.0
    %481 = vmatprep.subr.mxu0 0.0
    %482 = vmatpush2.msra.mxu0 0.0
    %483 = vmatprep.subr.mxu0 0.0
    %484 = vmatpush2.msra.mxu0 0.0
    %485 = vmatprep.subr.mxu0 0.0
    %486 = vmatpush2.msra.mxu0 0.0
    %487 = vmatprep.subr.mxu0 0.0
    %488 = vmatpush2.msra.mxu0 0.0
    %489 = vmatprep.subr.mxu0 0.0
    %490 = vmatpush2.msra.mxu0 0.0
    %491 = vmatprep.subr.mxu0 0.0
    %492 = vmatpush2.msra.mxu0 0.0
    %493 = vmatprep.mubr.f32.mxu0 0.0
    %494 = vmatmul.mubr.f32.gmra.mxu0 %v427
    %v495 = vpop.f32.mrf.mxu0
    %v496 = vadd.f32 0.0, %v495
    %v497 = vpop.f32.mrf.mxu0
    %498 = vdwg.mxu0
    %499 = vrot.lane.b32.xlu0 %v150, 120
    %v500 = vpop.permute.xlu0 %499
    %501 = vrot.lane.b32.xlu0 %v150, 88
    %v502 = vpop.permute.xlu0 %501
    %v503 = vsel %vm171, %v500, 0
    %v505 = vsel %vm171, %v502, 0
    %507 = vmatprep.subr.mxu0 0.0
    %508 = vmatpush1.xpose.msra.mxu0 0.0
    %509 = vmatprep.subr.mxu0 0.0
    %510 = vmatpush1.xpose.msra.mxu0 0.0
    %511 = vmatprep.subr.mxu0 0.0
    %512 = vmatpush1.xpose.msra.mxu0 0.0
    %513 = vmatprep.subr.mxu0 0.0
    %514 = vmatpush1.xpose.msra.mxu0 0.0
    %515 = vmatprep.subr.mxu0 0.0
    %516 = vmatpush1.xpose.msra.mxu0 0.0
    %517 = vmatprep.subr.mxu0 0.0
    %518 = vmatpush1.xpose.msra.mxu0 0.0
    %519 = vmatprep.subr.mxu0 0.0
    %520 = vmatpush1.xpose.msra.mxu0 0.0
    %521 = vmatprep.subr.mxu0 0.0
    %522 = vmatpush1.xpose.msra.mxu0 0.0
    %523 = vmatprep.subr.mxu0 0.0
    %524 = vmatpush1.xpose.msra.mxu0 0.0
    %525 = vmatprep.subr.mxu0 0.0
    %526 = vmatpush1.xpose.msra.mxu0 0.0
    %527 = vmatprep.subr.mxu0 0.0
    %528 = vmatpush1.xpose.msra.mxu0 0.0
    %529 = vmatprep.subr.mxu0 0.0
    %530 = vmatpush1.xpose.msra.mxu0 0.0
    %531 = vmatprep.subr.mxu0 0.0
    %532 = vmatpush1.xpose.msra.mxu0 0.0
    %533 = vmatprep.subr.mxu0 0.0
    %534 = vmatpush1.xpose.msra.mxu0 0.0
    %535 = vmatprep.subr.mxu0 0.0
    %536 = vmatpush1.xpose.msra.mxu0 0.0
    %537 = vmatprep.subr.mxu0 0.0
    %538 = vmatpush1.xpose.msra.mxu0 %v505
    %539 = vmatprep.subr.mxu0 0.0
    %540 = vmatpush2.xpose.msra.mxu0 0.0
    %541 = vmatprep.subr.mxu0 0.0
    %542 = vmatpush2.xpose.msra.mxu0 0.0
    %543 = vmatprep.subr.mxu0 0.0
    %544 = vmatpush2.xpose.msra.mxu0 0.0
    %545 = vmatprep.subr.mxu0 0.0
    %546 = vmatpush2.xpose.msra.mxu0 0.0
    %547 = vmatprep.subr.mxu0 0.0
    %548 = vmatpush2.xpose.msra.mxu0 0.0
    %549 = vmatprep.subr.mxu0 0.0
    %550 = vmatpush2.xpose.msra.mxu0 0.0
    %551 = vmatprep.subr.mxu0 0.0
    %552 = vmatpush2.xpose.msra.mxu0 0.0
    %553 = vmatprep.subr.mxu0 0.0
    %554 = vmatpush2.xpose.msra.mxu0 0.0
    %555 = vmatprep.subr.mxu0 0.0
    %556 = vmatpush2.xpose.msra.mxu0 0.0
    %557 = vmatprep.subr.mxu0 0.0
    %558 = vmatpush2.xpose.msra.mxu0 0.0
    %559 = vmatprep.subr.mxu0 0.0
    %560 = vmatpush2.xpose.msra.mxu0 0.0
    %561 = vmatprep.subr.mxu0 0.0
    %562 = vmatpush2.xpose.msra.mxu0 0.0
    %563 = vmatprep.subr.mxu0 0.0
    %564 = vmatpush2.xpose.msra.mxu0 0.0
    %565 = vmatprep.subr.mxu0 0.0
    %566 = vmatpush2.xpose.msra.mxu0 0.0
    %567 = vmatprep.subr.mxu0 0.0
    %568 = vmatpush2.xpose.msra.mxu0 0.0
    %569 = vmatprep.subr.mxu0 0.0
    %570 = vmatpush2.xpose.msra.mxu0 0.0
    %571 = vmatprep.mubr.f32.mxu0 0.0
    %572 = vmatmul.mubr.f32.gmra.mxu0 %v503
    %v573 = vpop.f32.mrf.mxu0
    %v574 = vadd.f32 0.0, %v573
    %v575 = vpop.f32.mrf.mxu0
    %576 = vdwg.mxu0
    %577 = vrot.lane.b32.xlu0 %v155, 120
    %v578 = vpop.permute.xlu0 %577
    %579 = vrot.lane.b32.xlu0 %v155, 88
    %v580 = vpop.permute.xlu0 %579
    %v581 = vsel %vm171, %v578, 0
    %v583 = vsel %vm171, %v580, 0
    %585 = vmatprep.subr.mxu0 0.0
    %586 = vmatpush1.xpose.msra.mxu0 0.0
    %587 = vmatprep.subr.mxu0 0.0
    %588 = vmatpush1.xpose.msra.mxu0 0.0
    %589 = vmatprep.subr.mxu0 0.0
    %590 = vmatpush1.xpose.msra.mxu0 0.0
    %591 = vmatprep.subr.mxu0 0.0
    %592 = vmatpush1.xpose.msra.mxu0 0.0
    %593 = vmatprep.subr.mxu0 0.0
    %594 = vmatpush1.xpose.msra.mxu0 0.0
    %595 = vmatprep.subr.mxu0 0.0
    %596 = vmatpush1.xpose.msra.mxu0 0.0
    %597 = vmatprep.subr.mxu0 0.0
    %598 = vmatpush1.xpose.msra.mxu0 0.0
    %599 = vmatprep.subr.mxu0 0.0
    %600 = vmatpush1.xpose.msra.mxu0 0.0
    %601 = vmatprep.subr.mxu0 0.0
    %602 = vmatpush1.xpose.msra.mxu0 0.0
    %603 = vmatprep.subr.mxu0 0.0
    %604 = vmatpush1.xpose.msra.mxu0 0.0
    %605 = vmatprep.subr.mxu0 0.0
    %606 = vmatpush1.xpose.msra.mxu0 0.0
    %607 = vmatprep.subr.mxu0 0.0
    %608 = vmatpush1.xpose.msra.mxu0 0.0
    %609 = vmatprep.subr.mxu0 0.0
    %610 = vmatpush1.xpose.msra.mxu0 0.0
    %611 = vmatprep.subr.mxu0 0.0
    %612 = vmatpush1.xpose.msra.mxu0 0.0
    %613 = vmatprep.subr.mxu0 0.0
    %614 = vmatpush1.xpose.msra.mxu0 0.0
    %615 = vmatprep.subr.mxu0 0.0
    %616 = vmatpush1.xpose.msra.mxu0 %v583
    %617 = vmatprep.subr.mxu0 0.0
    %618 = vmatpush2.xpose.msra.mxu0 0.0
    %619 = vmatprep.subr.mxu0 0.0
    %620 = vmatpush2.xpose.msra.mxu0 0.0
    %621 = vmatprep.subr.mxu0 0.0
    %622 = vmatpush2.xpose.msra.mxu0 0.0
    %623 = vmatprep.subr.mxu0 0.0
    %624 = vmatpush2.xpose.msra.mxu0 0.0
    %625 = vmatprep.subr.mxu0 0.0
    %626 = vmatpush2.xpose.msra.mxu0 0.0
    %627 = vmatprep.subr.mxu0 0.0
    %628 = vmatpush2.xpose.msra.mxu0 0.0
    %629 = vmatprep.subr.mxu0 0.0
    %630 = vmatpush2.xpose.msra.mxu0 0.0
    %631 = vmatprep.subr.mxu0 0.0
    %632 = vmatpush2.xpose.msra.mxu0 0.0
    %633 = vmatprep.subr.mxu0 0.0
    %634 = vmatpush2.xpose.msra.mxu0 0.0
    %635 = vmatprep.subr.mxu0 0.0
    %636 = vmatpush2.xpose.msra.mxu0 0.0
    %637 = vmatprep.subr.mxu0 0.0
    %638 = vmatpush2.xpose.msra.mxu0 0.0
    %639 = vmatprep.subr.mxu0 0.0
    %640 = vmatpush2.xpose.msra.mxu0 0.0
    %641 = vmatprep.subr.mxu0 0.0
    %642 = vmatpush2.xpose.msra.mxu0 0.0
    %643 = vmatprep.subr.mxu0 0.0
    %644 = vmatpush2.xpose.msra.mxu0 0.0
    %645 = vmatprep.subr.mxu0 0.0
    %646 = vmatpush2.xpose.msra.mxu0 0.0
    %647 = vmatprep.subr.mxu0 0.0
    %648 = vmatpush2.xpose.msra.mxu0 0.0
    %649 = vmatprep.mubr.f32.mxu0 0.0
    %650 = vmatmul.mubr.f32.gmra.mxu0 %v581
    %v651 = vpop.f32.mrf.mxu0
    %v652 = vadd.f32 0.0, %v651
    %v653 = vpop.f32.mrf.mxu0
    %654 = vdwg.mxu0
    %v655 = vsel %vm162, -1e+18, %v574
    %v656 = vsel %vm163, -1e+18, %v652
    %v657 = vsel %vm171, %v655, -inf
    %658 = vmax.xlane.f32.xlu0 %v657
    %v659 = vpop.xlane.xlu0 %658
    %v660 = vsel %vm171, %v656, -inf
    %661 = vmax.xlane.f32.xlu0 %v660
    %v662 = vpop.xlane.xlu0 %661
    %v663 = vsub.f32 %v655, %v659
    %v664 = vsub.f32 %v656, %v662
    %v665 = vmul.f32 %v663, 1.442695
    %v666 = vpow.pop %v665
    %v667 = vmul.f32 %v664, 1.442695
    %v668 = vpow.pop %v667
    %v669 = vsel %vm171, %v666, 0.0
    %670 = vadd.xlane.f32.xlu0 %v669
    %v671 = vpop.xlane.xlu0 %670
    %v672 = vsel %vm171, %v668, 0.0
    %673 = vadd.xlane.f32.xlu0 %v672
    %v674 = vpop.xlane.xlu0 %673
    %v675 = vrcp.pop %v671
    %v676 = vrcp.pop %v674
    %v677 = vmul.f32 %v666, %v675
    %v678 = vmul.f32 %v668, %v676
    %679 = vrot.lane.b32.xlu0 %v150, 56
    %v680 = vpop.permute.xlu0 %679
    %v683 = vsel %vm171, %v677, 0
    %685 = vmatprep.subr.mxu0 0.0
    %686 = vmatpush1.msra.mxu0 0.0
    %687 = vmatprep.subr.mxu0 0.0
    %688 = vmatpush1.msra.mxu0 0.0
    %689 = vmatprep.subr.mxu0 0.0
    %690 = vmatpush1.msra.mxu0 0.0
    %691 = vmatprep.subr.mxu0 0.0
    %692 = vmatpush1.msra.mxu0 0.0
    %693 = vmatprep.subr.mxu0 0.0
    %694 = vmatpush1.msra.mxu0 0.0
    %695 = vmatprep.subr.mxu0 0.0
    %696 = vmatpush1.msra.mxu0 0.0
    %697 = vmatprep.subr.mxu0 0.0
    %698 = vmatpush1.msra.mxu0 0.0
    %699 = vmatprep.subr.mxu0 0.0
    %700 = vmatpush1.msra.mxu0 0.0
    %701 = vmatprep.subr.mxu0 0.0
    %702 = vmatpush1.msra.mxu0 0.0
    %703 = vmatprep.subr.mxu0 0.0
    %704 = vmatpush1.msra.mxu0 0.0
    %705 = vmatprep.subr.mxu0 0.0
    %706 = vmatpush1.msra.mxu0 0.0
    %707 = vmatprep.subr.mxu0 0.0
    %708 = vmatpush1.msra.mxu0 0.0
    %709 = vmatprep.subr.mxu0 0.0
    %710 = vmatpush1.msra.mxu0 0.0
    %711 = vmatprep.subr.mxu0 0.0
    %712 = vmatpush1.msra.mxu0 0.0
    %713 = vmatprep.subr.mxu0 0.0
    %714 = vmatpush1.msra.mxu0 0.0
    %715 = vmatprep.subr.mxu0 0.0
    %716 = vmatpush1.msra.mxu0 %v680
    %717 = vmatprep.subr.mxu0 0.0
    %718 = vmatpush2.msra.mxu0 0.0
    %719 = vmatprep.subr.mxu0 0.0
    %720 = vmatpush2.msra.mxu0 0.0
    %721 = vmatprep.subr.mxu0 0.0
    %722 = vmatpush2.msra.mxu0 0.0
    %723 = vmatprep.subr.mxu0 0.0
    %724 = vmatpush2.msra.mxu0 0.0
    %725 = vmatprep.subr.mxu0 0.0
    %726 = vmatpush2.msra.mxu0 0.0
    %727 = vmatprep.subr.mxu0 0.0
    %728 = vmatpush2.msra.mxu0 0.0
    %729 = vmatprep.subr.mxu0 0.0
    %730 = vmatpush2.msra.mxu0 0.0
    %731 = vmatprep.subr.mxu0 0.0
    %732 = vmatpush2.msra.mxu0 0.0
    %733 = vmatprep.subr.mxu0 0.0
    %734 = vmatpush2.msra.mxu0 0.0
    %735 = vmatprep.subr.mxu0 0.0
    %736 = vmatpush2.msra.mxu0 0.0
    %737 = vmatprep.subr.mxu0 0.0
    %738 = vmatpush2.msra.mxu0 0.0
    %739 = vmatprep.subr.mxu0 0.0
    %740 = vmatpush2.msra.mxu0 0.0
    %741 = vmatprep.subr.mxu0 0.0
    %742 = vmatpush2.msra.mxu0 0.0
    %743 = vmatprep.subr.mxu0 0.0
    %744 = vmatpush2.msra.mxu0 0.0
    %745 = vmatprep.subr.mxu0 0.0
    %746 = vmatpush2.msra.mxu0 0.0
    %747 = vmatprep.subr.mxu0 0.0
    %748 = vmatpush2.msra.mxu0 0.0
    %749 = vmatprep.mubr.f32.mxu0 0.0
    %750 = vmatmul.mubr.f32.gmra.mxu0 %v683
    %v751 = vpop.f32.mrf.mxu0
    %v752 = vadd.f32 0.0, %v751
    %v753 = vpop.f32.mrf.mxu0
    %754 = vdwg.mxu0
    %755 = vrot.lane.b32.xlu0 %v155, 56
    %v756 = vpop.permute.xlu0 %755
    %v759 = vsel %vm171, %v678, 0
    %761 = vmatprep.subr.mxu0 0.0
    %762 = vmatpush1.msra.mxu0 0.0
    %763 = vmatprep.subr.mxu0 0.0
    %764 = vmatpush1.msra.mxu0 0.0
    %765 = vmatprep.subr.mxu0 0.0
    %766 = vmatpush1.msra.mxu0 0.0
    %767 = vmatprep.subr.mxu0 0.0
    %768 = vmatpush1.msra.mxu0 0.0
    %769 = vmatprep.subr.mxu0 0.0
    %770 = vmatpush1.msra.mxu0 0.0
    %771 = vmatprep.subr.mxu0 0.0
    %772 = vmatpush1.msra.mxu0 0.0
    %773 = vmatprep.subr.mxu0 0.0
    %774 = vmatpush1.msra.mxu0 0.0
    %775 = vmatprep.subr.mxu0 0.0
    %776 = vmatpush1.msra.mxu0 0.0
    %777 = vmatprep.subr.mxu0 0.0
    %778 = vmatpush1.msra.mxu0 0.0
    %779 = vmatprep.subr.mxu0 0.0
    %780 = vmatpush1.msra.mxu0 0.0
    %781 = vmatprep.subr.mxu0 0.0
    %782 = vmatpush1.msra.mxu0 0.0
    %783 = vmatprep.subr.mxu0 0.0
    %784 = vmatpush1.msra.mxu0 0.0
    %785 = vmatprep.subr.mxu0 0.0
    %786 = vmatpush1.msra.mxu0 0.0
    %787 = vmatprep.subr.mxu0 0.0
    %788 = vmatpush1.msra.mxu0 0.0
    %789 = vmatprep.subr.mxu0 0.0
    %790 = vmatpush1.msra.mxu0 0.0
    %791 = vmatprep.subr.mxu0 0.0
    %792 = vmatpush1.msra.mxu0 %v756
    %793 = vmatprep.subr.mxu0 0.0
    %794 = vmatpush2.msra.mxu0 0.0
    %795 = vmatprep.subr.mxu0 0.0
    %796 = vmatpush2.msra.mxu0 0.0
    %797 = vmatprep.subr.mxu0 0.0
    %798 = vmatpush2.msra.mxu0 0.0
    %799 = vmatprep.subr.mxu0 0.0
    %800 = vmatpush2.msra.mxu0 0.0
    %801 = vmatprep.subr.mxu0 0.0
    %802 = vmatpush2.msra.mxu0 0.0
    %803 = vmatprep.subr.mxu0 0.0
    %804 = vmatpush2.msra.mxu0 0.0
    %805 = vmatprep.subr.mxu0 0.0
    %806 = vmatpush2.msra.mxu0 0.0
    %807 = vmatprep.subr.mxu0 0.0
    %808 = vmatpush2.msra.mxu0 0.0
    %809 = vmatprep.subr.mxu0 0.0
    %810 = vmatpush2.msra.mxu0 0.0
    %811 = vmatprep.subr.mxu0 0.0
    %812 = vmatpush2.msra.mxu0 0.0
    %813 = vmatprep.subr.mxu0 0.0
    %814 = vmatpush2.msra.mxu0 0.0
    %815 = vmatprep.subr.mxu0 0.0
    %816 = vmatpush2.msra.mxu0 0.0
    %817 = vmatprep.subr.mxu0 0.0
    %818 = vmatpush2.msra.mxu0 0.0
    %819 = vmatprep.subr.mxu0 0.0
    %820 = vmatpush2.msra.mxu0 0.0
    %821 = vmatprep.subr.mxu0 0.0
    %822 = vmatpush2.msra.mxu0 0.0
    %823 = vmatprep.subr.mxu0 0.0
    %824 = vmatpush2.msra.mxu0 0.0
    %825 = vmatprep.mubr.f32.mxu0 0.0
    %826 = vmatmul.mubr.f32.gmra.mxu0 %v759
    %v827 = vpop.f32.mrf.mxu0
    %v828 = vadd.f32 0.0, %v827
    %v829 = vpop.f32.mrf.mxu0
    %830 = vdwg.mxu0
    %v832 = vsel %vm171, %v752, 0
    %v835 = vsel %vm171, %v828, 0
    %837 = vmatprep.subr.mxu0 0.0
    %838 = vmatpush1.msra.mxu0 0.0
    %839 = vmatprep.subr.mxu0 0.0
    %840 = vmatpush1.msra.mxu0 0.0
    %841 = vmatprep.subr.mxu0 0.0
    %842 = vmatpush1.msra.mxu0 0.0
    %843 = vmatprep.subr.mxu0 0.0
    %844 = vmatpush1.msra.mxu0 0.0
    %845 = vmatprep.subr.mxu0 0.0
    %846 = vmatpush1.msra.mxu0 0.0
    %847 = vmatprep.subr.mxu0 0.0
    %848 = vmatpush1.msra.mxu0 0.0
    %849 = vmatprep.subr.mxu0 0.0
    %850 = vmatpush1.msra.mxu0 0.0
    %851 = vmatprep.subr.mxu0 0.0
    %852 = vmatpush1.msra.mxu0 0.0
    %853 = vmatprep.subr.mxu0 0.0
    %854 = vmatpush1.msra.mxu0 0.0
    %855 = vmatprep.subr.mxu0 0.0
    %856 = vmatpush1.msra.mxu0 0.0
    %857 = vmatprep.subr.mxu0 0.0
    %858 = vmatpush1.msra.mxu0 0.0
    %859 = vmatprep.subr.mxu0 0.0
    %860 = vmatpush1.msra.mxu0 0.0
    %861 = vmatprep.subr.mxu0 0.0
    %862 = vmatpush1.msra.mxu0 0.0
    %863 = vmatprep.subr.mxu0 0.0
    %864 = vmatpush1.msra.mxu0 0.0
    %865 = vmatprep.subr.mxu0 0.0
    %866 = vmatpush1.msra.mxu0 0.0
    %867 = vmatprep.subr.mxu0 0.0
    %868 = vmatpush1.msra.mxu0 %v165
    %869 = vmatprep.subr.mxu0 0.0
    %870 = vmatpush2.msra.mxu0 0.0
    %871 = vmatprep.subr.mxu0 0.0
    %872 = vmatpush2.msra.mxu0 0.0
    %873 = vmatprep.subr.mxu0 0.0
    %874 = vmatpush2.msra.mxu0 0.0
    %875 = vmatprep.subr.mxu0 0.0
    %876 = vmatpush2.msra.mxu0 0.0
    %877 = vmatprep.subr.mxu0 0.0
    %878 = vmatpush2.msra.mxu0 0.0
    %879 = vmatprep.subr.mxu0 0.0
    %880 = vmatpush2.msra.mxu0 0.0
    %881 = vmatprep.subr.mxu0 0.0
    %882 = vmatpush2.msra.mxu0 0.0
    %883 = vmatprep.subr.mxu0 0.0
    %884 = vmatpush2.msra.mxu0 0.0
    %885 = vmatprep.subr.mxu0 0.0
    %886 = vmatpush2.msra.mxu0 0.0
    %887 = vmatprep.subr.mxu0 0.0
    %888 = vmatpush2.msra.mxu0 0.0
    %889 = vmatprep.subr.mxu0 0.0
    %890 = vmatpush2.msra.mxu0 0.0
    %891 = vmatprep.subr.mxu0 0.0
    %892 = vmatpush2.msra.mxu0 0.0
    %893 = vmatprep.subr.mxu0 0.0
    %894 = vmatpush2.msra.mxu0 0.0
    %895 = vmatprep.subr.mxu0 0.0
    %896 = vmatpush2.msra.mxu0 0.0
    %897 = vmatprep.subr.mxu0 0.0
    %898 = vmatpush2.msra.mxu0 0.0
    %899 = vmatprep.subr.mxu0 0.0
    %900 = vmatpush2.msra.mxu0 0.0
    %901 = vmatprep.mubr.f32.mxu0 0.0
    %902 = vmatmul.mubr.f32.gmra.mxu0 %v832
    %v903 = vpop.f32.mrf.mxu0
    %v904 = vadd.f32 0.0, %v903
    %v905 = vpop.f32.mrf.mxu0
    %906 = vmatprep.mubr.f32.mxu0 0.0
    %907 = vmatmul.mubr.f32.gmra.mxu0 %v835
    %v908 = vpop.f32.mrf.mxu0
    %v909 = vadd.f32 0.0, %v908
    %v910 = vpop.f32.mrf.mxu0
    %911 = vdwg.mxu0
    %v913 = vsel %vm171, %v420, 0
    %v916 = vsel %vm171, %v496, 0
    %918 = vmatprep.subr.mxu0 0.0
    %919 = vmatpush1.msra.mxu0 0.0
    %920 = vmatprep.subr.mxu0 0.0
    %921 = vmatpush1.msra.mxu0 0.0
    %922 = vmatprep.subr.mxu0 0.0
    %923 = vmatpush1.msra.mxu0 0.0
    %924 = vmatprep.subr.mxu0 0.0
    %925 = vmatpush1.msra.mxu0 0.0
    %926 = vmatprep.subr.mxu0 0.0
    %927 = vmatpush1.msra.mxu0 0.0
    %928 = vmatprep.subr.mxu0 0.0
    %929 = vmatpush1.msra.mxu0 0.0
    %930 = vmatprep.subr.mxu0 0.0
    %931 = vmatpush1.msra.mxu0 0.0
    %932 = vmatprep.subr.mxu0 0.0
    %933 = vmatpush1.msra.mxu0 0.0
    %934 = vmatprep.subr.mxu0 0.0
    %935 = vmatpush1.msra.mxu0 0.0
    %936 = vmatprep.subr.mxu0 0.0
    %937 = vmatpush1.msra.mxu0 0.0
    %938 = vmatprep.subr.mxu0 0.0
    %939 = vmatpush1.msra.mxu0 0.0
    %940 = vmatprep.subr.mxu0 0.0
    %941 = vmatpush1.msra.mxu0 0.0
    %942 = vmatprep.subr.mxu0 0.0
    %943 = vmatpush1.msra.mxu0 0.0
    %944 = vmatprep.subr.mxu0 0.0
    %945 = vmatpush1.msra.mxu0 0.0
    %946 = vmatprep.subr.mxu0 0.0
    %947 = vmatpush1.msra.mxu0 0.0
    %948 = vmatprep.subr.mxu0 0.0
    %949 = vmatpush1.msra.mxu0 %v164
    %950 = vmatprep.subr.mxu0 0.0
    %951 = vmatpush2.msra.mxu0 0.0
    %952 = vmatprep.subr.mxu0 0.0
    %953 = vmatpush2.msra.mxu0 0.0
    %954 = vmatprep.subr.mxu0 0.0
    %955 = vmatpush2.msra.mxu0 0.0
    %956 = vmatprep.subr.mxu0 0.0
    %957 = vmatpush2.msra.mxu0 0.0
    %958 = vmatprep.subr.mxu0 0.0
    %959 = vmatpush2.msra.mxu0 0.0
    %960 = vmatprep.subr.mxu0 0.0
    %961 = vmatpush2.msra.mxu0 0.0
    %962 = vmatprep.subr.mxu0 0.0
    %963 = vmatpush2.msra.mxu0 0.0
    %964 = vmatprep.subr.mxu0 0.0
    %965 = vmatpush2.msra.mxu0 0.0
    %966 = vmatprep.subr.mxu0 0.0
    %967 = vmatpush2.msra.mxu0 0.0
    %968 = vmatprep.subr.mxu0 0.0
    %969 = vmatpush2.msra.mxu0 0.0
    %970 = vmatprep.subr.mxu0 0.0
    %971 = vmatpush2.msra.mxu0 0.0
    %972 = vmatprep.subr.mxu0 0.0
    %973 = vmatpush2.msra.mxu0 0.0
    %974 = vmatprep.subr.mxu0 0.0
    %975 = vmatpush2.msra.mxu0 0.0
    %976 = vmatprep.subr.mxu0 0.0
    %977 = vmatpush2.msra.mxu0 0.0
    %978 = vmatprep.subr.mxu0 0.0
    %979 = vmatpush2.msra.mxu0 0.0
    %980 = vmatprep.subr.mxu0 0.0
    %981 = vmatpush2.msra.mxu0 0.0
    %982 = vmatprep.mubr.f32.mxu0 0.0
    %983 = vmatmul.mubr.f32.gmra.mxu0 %v913
    %v984 = vpop.f32.mrf.mxu0
    %v985 = vadd.f32 %v904, %v984
    %v986 = vpop.f32.mrf.mxu0
    %987 = vmatprep.mubr.f32.mxu0 0.0
    %988 = vmatmul.mubr.f32.gmra.mxu0 %v916
    %v989 = vpop.f32.mrf.mxu0
    %v990 = vadd.f32 %v909, %v989
    %v991 = vpop.f32.mrf.mxu0
    %992 = vdwg.mxu0
    %993 = vrot.lane.b32.xlu0 %v150, 112
    %v994 = vpop.permute.xlu0 %993
    %995 = vrot.lane.b32.xlu0 %v150, 80
    %v996 = vpop.permute.xlu0 %995
    %v997 = vsel %vm171, %v994, 0
    %v999 = vsel %vm171, %v996, 0
    %1001 = vmatprep.subr.mxu0 0.0
    %1002 = vmatpush1.xpose.msra.mxu0 0.0
    %1003 = vmatprep.subr.mxu0 0.0
    %1004 = vmatpush1.xpose.msra.mxu0 0.0
    %1005 = vmatprep.subr.mxu0 0.0
    %1006 = vmatpush1.xpose.msra.mxu0 0.0
    %1007 = vmatprep.subr.mxu0 0.0
    %1008 = vmatpush1.xpose.msra.mxu0 0.0
    %1009 = vmatprep.subr.mxu0 0.0
    %1010 = vmatpush1.xpose.msra.mxu0 0.0
    %1011 = vmatprep.subr.mxu0 0.0
    %1012 = vmatpush1.xpose.msra.mxu0 0.0
    %1013 = vmatprep.subr.mxu0 0.0
    %1014 = vmatpush1.xpose.msra.mxu0 0.0
    %1015 = vmatprep.subr.mxu0 0.0
    %1016 = vmatpush1.xpose.msra.mxu0 0.0
    %1017 = vmatprep.subr.mxu0 0.0
    %1018 = vmatpush1.xpose.msra.mxu0 0.0
    %1019 = vmatprep.subr.mxu0 0.0
    %1020 = vmatpush1.xpose.msra.mxu0 0.0
    %1021 = vmatprep.subr.mxu0 0.0
    %1022 = vmatpush1.xpose.msra.mxu0 0.0
    %1023 = vmatprep.subr.mxu0 0.0
    %1024 = vmatpush1.xpose.msra.mxu0 0.0
    %1025 = vmatprep.subr.mxu0 0.0
    %1026 = vmatpush1.xpose.msra.mxu0 0.0
    %1027 = vmatprep.subr.mxu0 0.0
    %1028 = vmatpush1.xpose.msra.mxu0 0.0
    %1029 = vmatprep.subr.mxu0 0.0
    %1030 = vmatpush1.xpose.msra.mxu0 0.0
    %1031 = vmatprep.subr.mxu0 0.0
    %1032 = vmatpush1.xpose.msra.mxu0 %v999
    %1033 = vmatprep.subr.mxu0 0.0
    %1034 = vmatpush2.xpose.msra.mxu0 0.0
    %1035 = vmatprep.subr.mxu0 0.0
    %1036 = vmatpush2.xpose.msra.mxu0 0.0
    %1037 = vmatprep.subr.mxu0 0.0
    %1038 = vmatpush2.xpose.msra.mxu0 0.0
    %1039 = vmatprep.subr.mxu0 0.0
    %1040 = vmatpush2.xpose.msra.mxu0 0.0
    %1041 = vmatprep.subr.mxu0 0.0
    %1042 = vmatpush2.xpose.msra.mxu0 0.0
    %1043 = vmatprep.subr.mxu0 0.0
    %1044 = vmatpush2.xpose.msra.mxu0 0.0
    %1045 = vmatprep.subr.mxu0 0.0
    %1046 = vmatpush2.xpose.msra.mxu0 0.0
    %1047 = vmatprep.subr.mxu0 0.0
    %1048 = vmatpush2.xpose.msra.mxu0 0.0
    %1049 = vmatprep.subr.mxu0 0.0
    %1050 = vmatpush2.xpose.msra.mxu0 0.0
    %1051 = vmatprep.subr.mxu0 0.0
    %1052 = vmatpush2.xpose.msra.mxu0 0.0
    %1053 = vmatprep.subr.mxu0 0.0
    %1054 = vmatpush2.xpose.msra.mxu0 0.0
    %1055 = vmatprep.subr.mxu0 0.0
    %1056 = vmatpush2.xpose.msra.mxu0 0.0
    %1057 = vmatprep.subr.mxu0 0.0
    %1058 = vmatpush2.xpose.msra.mxu0 0.0
    %1059 = vmatprep.subr.mxu0 0.0
    %1060 = vmatpush2.xpose.msra.mxu0 0.0
    %1061 = vmatprep.subr.mxu0 0.0
    %1062 = vmatpush2.xpose.msra.mxu0 0.0
    %1063 = vmatprep.subr.mxu0 0.0
    %1064 = vmatpush2.xpose.msra.mxu0 0.0
    %1065 = vmatprep.mubr.f32.mxu0 0.0
    %1066 = vmatmul.mubr.f32.gmra.mxu0 %v997
    %v1067 = vpop.f32.mrf.mxu0
    %v1068 = vadd.f32 0.0, %v1067
    %v1069 = vpop.f32.mrf.mxu0
    %1070 = vdwg.mxu0
    %1071 = vrot.lane.b32.xlu0 %v155, 112
    %v1072 = vpop.permute.xlu0 %1071
    %1073 = vrot.lane.b32.xlu0 %v155, 80
    %v1074 = vpop.permute.xlu0 %1073
    %v1075 = vsel %vm171, %v1072, 0
    %v1077 = vsel %vm171, %v1074, 0
    %1079 = vmatprep.subr.mxu0 0.0
    %1080 = vmatpush1.xpose.msra.mxu0 0.0
    %1081 = vmatprep.subr.mxu0 0.0
    %1082 = vmatpush1.xpose.msra.mxu0 0.0
    %1083 = vmatprep.subr.mxu0 0.0
    %1084 = vmatpush1.xpose.msra.mxu0 0.0
    %1085 = vmatprep.subr.mxu0 0.0
    %1086 = vmatpush1.xpose.msra.mxu0 0.0
    %1087 = vmatprep.subr.mxu0 0.0
    %1088 = vmatpush1.xpose.msra.mxu0 0.0
    %1089 = vmatprep.subr.mxu0 0.0
    %1090 = vmatpush1.xpose.msra.mxu0 0.0
    %1091 = vmatprep.subr.mxu0 0.0
    %1092 = vmatpush1.xpose.msra.mxu0 0.0
    %1093 = vmatprep.subr.mxu0 0.0
    %1094 = vmatpush1.xpose.msra.mxu0 0.0
    %1095 = vmatprep.subr.mxu0 0.0
    %1096 = vmatpush1.xpose.msra.mxu0 0.0
    %1097 = vmatprep.subr.mxu0 0.0
    %1098 = vmatpush1.xpose.msra.mxu0 0.0
    %1099 = vmatprep.subr.mxu0 0.0
    %1100 = vmatpush1.xpose.msra.mxu0 0.0
    %1101 = vmatprep.subr.mxu0 0.0
    %1102 = vmatpush1.xpose.msra.mxu0 0.0
    %1103 = vmatprep.subr.mxu0 0.0
    %1104 = vmatpush1.xpose.msra.mxu0 0.0
    %1105 = vmatprep.subr.mxu0 0.0
    %1106 = vmatpush1.xpose.msra.mxu0 0.0
    %1107 = vmatprep.subr.mxu0 0.0
    %1108 = vmatpush1.xpose.msra.mxu0 0.0
    %1109 = vmatprep.subr.mxu0 0.0
    %1110 = vmatpush1.xpose.msra.mxu0 %v1077
    %1111 = vmatprep.subr.mxu0 0.0
    %1112 = vmatpush2.xpose.msra.mxu0 0.0
    %1113 = vmatprep.subr.mxu0 0.0
    %1114 = vmatpush2.xpose.msra.mxu0 0.0
    %1115 = vmatprep.subr.mxu0 0.0
    %1116 = vmatpush2.xpose.msra.mxu0 0.0
    %1117 = vmatprep.subr.mxu0 0.0
    %1118 = vmatpush2.xpose.msra.mxu0 0.0
    %1119 = vmatprep.subr.mxu0 0.0
    %1120 = vmatpush2.xpose.msra.mxu0 0.0
    %1121 = vmatprep.subr.mxu0 0.0
    %1122 = vmatpush2.xpose.msra.mxu0 0.0
    %1123 = vmatprep.subr.mxu0 0.0
    %1124 = vmatpush2.xpose.msra.mxu0 0.0
    %1125 = vmatprep.subr.mxu0 0.0
    %1126 = vmatpush2.xpose.msra.mxu0 0.0
    %1127 = vmatprep.subr.mxu0 0.0
    %1128 = vmatpush2.xpose.msra.mxu0 0.0
    %1129 = vmatprep.subr.mxu0 0.0
    %1130 = vmatpush2.xpose.msra.mxu0 0.0
    %1131 = vmatprep.subr.mxu0 0.0
    %1132 = vmatpush2.xpose.msra.mxu0 0.0
    %1133 = vmatprep.subr.mxu0 0.0
    %1134 = vmatpush2.xpose.msra.mxu0 0.0
    %1135 = vmatprep.subr.mxu0 0.0
    %1136 = vmatpush2.xpose.msra.mxu0 0.0
    %1137 = vmatprep.subr.mxu0 0.0
    %1138 = vmatpush2.xpose.msra.mxu0 0.0
    %1139 = vmatprep.subr.mxu0 0.0
    %1140 = vmatpush2.xpose.msra.mxu0 0.0
    %1141 = vmatprep.subr.mxu0 0.0
    %1142 = vmatpush2.xpose.msra.mxu0 0.0
    %1143 = vmatprep.mubr.f32.mxu0 0.0
    %1144 = vmatmul.mubr.f32.gmra.mxu0 %v1075
    %v1145 = vpop.f32.mrf.mxu0
    %v1146 = vadd.f32 0.0, %v1145
    %v1147 = vpop.f32.mrf.mxu0
    %1148 = vdwg.mxu0
    %v1149 = vsel %vm162, -1e+18, %v1068
    %v1150 = vsel %vm163, -1e+18, %v1146
    %v1151 = vsel %vm171, %v1149, -inf
    %1152 = vmax.xlane.f32.xlu0 %v1151
    %v1153 = vpop.xlane.xlu0 %1152
    %v1154 = vsel %vm171, %v1150, -inf
    %1155 = vmax.xlane.f32.xlu0 %v1154
    %v1156 = vpop.xlane.xlu0 %1155
    %v1157 = vsub.f32 %v1149, %v1153
    %v1158 = vsub.f32 %v1150, %v1156
    %v1159 = vmul.f32 %v1157, 1.442695
    %v1160 = vpow.pop %v1159
    %v1161 = vmul.f32 %v1158, 1.442695
    %v1162 = vpow.pop %v1161
    %v1163 = vsel %vm171, %v1160, 0.0
    %1164 = vadd.xlane.f32.xlu0 %v1163
    %v1165 = vpop.xlane.xlu0 %1164
    %v1166 = vsel %vm171, %v1162, 0.0
    %1167 = vadd.xlane.f32.xlu0 %v1166
    %v1168 = vpop.xlane.xlu0 %1167
    %v1169 = vrcp.pop %v1165
    %v1170 = vrcp.pop %v1168
    %v1171 = vmul.f32 %v1160, %v1169
    %v1172 = vmul.f32 %v1162, %v1170
    %1173 = vrot.lane.b32.xlu0 %v150, 48
    %v1174 = vpop.permute.xlu0 %1173
    %v1177 = vsel %vm171, %v1171, 0
    %1179 = vmatprep.subr.mxu0 0.0
    %1180 = vmatpush1.msra.mxu0 0.0
    %1181 = vmatprep.subr.mxu0 0.0
    %1182 = vmatpush1.msra.mxu0 0.0
    %1183 = vmatprep.subr.mxu0 0.0
    %1184 = vmatpush1.msra.mxu0 0.0
    %1185 = vmatprep.subr.mxu0 0.0
    %1186 = vmatpush1.msra.mxu0 0.0
    %1187 = vmatprep.subr.mxu0 0.0
    %1188 = vmatpush1.msra.mxu0 0.0
    %1189 = vmatprep.subr.mxu0 0.0
    %1190 = vmatpush1.msra.mxu0 0.0
    %1191 = vmatprep.subr.mxu0 0.0
    %1192 = vmatpush1.msra.mxu0 0.0
    %1193 = vmatprep.subr.mxu0 0.0
    %1194 = vmatpush1.msra.mxu0 0.0
    %1195 = vmatprep.subr.mxu0 0.0
    %1196 = vmatpush1.msra.mxu0 0.0
    %1197 = vmatprep.subr.mxu0 0.0
    %1198 = vmatpush1.msra.mxu0 0.0
    %1199 = vmatprep.subr.mxu0 0.0
    %1200 = vmatpush1.msra.mxu0 0.0
    %1201 = vmatprep.subr.mxu0 0.0
    %1202 = vmatpush1.msra.mxu0 0.0
    %1203 = vmatprep.subr.mxu0 0.0
    %1204 = vmatpush1.msra.mxu0 0.0
    %1205 = vmatprep.subr.mxu0 0.0
    %1206 = vmatpush1.msra.mxu0 0.0
    %1207 = vmatprep.subr.mxu0 0.0
    %1208 = vmatpush1.msra.mxu0 0.0
    %1209 = vmatprep.subr.mxu0 0.0
    %1210 = vmatpush1.msra.mxu0 %v1174
    %1211 = vmatprep.subr.mxu0 0.0
    %1212 = vmatpush2.msra.mxu0 0.0
    %1213 = vmatprep.subr.mxu0 0.0
    %1214 = vmatpush2.msra.mxu0 0.0
    %1215 = vmatprep.subr.mxu0 0.0
    %1216 = vmatpush2.msra.mxu0 0.0
    %1217 = vmatprep.subr.mxu0 0.0
    %1218 = vmatpush2.msra.mxu0 0.0
    %1219 = vmatprep.subr.mxu0 0.0
    %1220 = vmatpush2.msra.mxu0 0.0
    %1221 = vmatprep.subr.mxu0 0.0
    %1222 = vmatpush2.msra.mxu0 0.0
    %1223 = vmatprep.subr.mxu0 0.0
    %1224 = vmatpush2.msra.mxu0 0.0
    %1225 = vmatprep.subr.mxu0 0.0
    %1226 = vmatpush2.msra.mxu0 0.0
    %1227 = vmatprep.subr.mxu0 0.0
    %1228 = vmatpush2.msra.mxu0 0.0
    %1229 = vmatprep.subr.mxu0 0.0
    %1230 = vmatpush2.msra.mxu0 0.0
    %1231 = vmatprep.subr.mxu0 0.0
    %1232 = vmatpush2.msra.mxu0 0.0
    %1233 = vmatprep.subr.mxu0 0.0
    %1234 = vmatpush2.msra.mxu0 0.0
    %1235 = vmatprep.subr.mxu0 0.0
    %1236 = vmatpush2.msra.mxu0 0.0
    %1237 = vmatprep.subr.mxu0 0.0
    %1238 = vmatpush2.msra.mxu0 0.0
    %1239 = vmatprep.subr.mxu0 0.0
    %1240 = vmatpush2.msra.mxu0 0.0
    %1241 = vmatprep.subr.mxu0 0.0
    %1242 = vmatpush2.msra.mxu0 0.0
    %1243 = vmatprep.mubr.f32.mxu0 0.0
    %1244 = vmatmul.mubr.f32.gmra.mxu0 %v1177
    %v1245 = vpop.f32.mrf.mxu0
    %v1246 = vadd.f32 0.0, %v1245
    %v1247 = vpop.f32.mrf.mxu0
    %1248 = vdwg.mxu0
    %1249 = vrot.lane.b32.xlu0 %v155, 48
    %v1250 = vpop.permute.xlu0 %1249
    %v1253 = vsel %vm171, %v1172, 0
    %1255 = vmatprep.subr.mxu0 0.0
    %1256 = vmatpush1.msra.mxu0 0.0
    %1257 = vmatprep.subr.mxu0 0.0
    %1258 = vmatpush1.msra.mxu0 0.0
    %1259 = vmatprep.subr.mxu0 0.0
    %1260 = vmatpush1.msra.mxu0 0.0
    %1261 = vmatprep.subr.mxu0 0.0
    %1262 = vmatpush1.msra.mxu0 0.0
    %1263 = vmatprep.subr.mxu0 0.0
    %1264 = vmatpush1.msra.mxu0 0.0
    %1265 = vmatprep.subr.mxu0 0.0
    %1266 = vmatpush1.msra.mxu0 0.0
    %1267 = vmatprep.subr.mxu0 0.0
    %1268 = vmatpush1.msra.mxu0 0.0
    %1269 = vmatprep.subr.mxu0 0.0
    %1270 = vmatpush1.msra.mxu0 0.0
    %1271 = vmatprep.subr.mxu0 0.0
    %1272 = vmatpush1.msra.mxu0 0.0
    %1273 = vmatprep.subr.mxu0 0.0
    %1274 = vmatpush1.msra.mxu0 0.0
    %1275 = vmatprep.subr.mxu0 0.0
    %1276 = vmatpush1.msra.mxu0 0.0
    %1277 = vmatprep.subr.mxu0 0.0
    %1278 = vmatpush1.msra.mxu0 0.0
    %1279 = vmatprep.subr.mxu0 0.0
    %1280 = vmatpush1.msra.mxu0 0.0
    %1281 = vmatprep.subr.mxu0 0.0
    %1282 = vmatpush1.msra.mxu0 0.0
    %1283 = vmatprep.subr.mxu0 0.0
    %1284 = vmatpush1.msra.mxu0 0.0
    %1285 = vmatprep.subr.mxu0 0.0
    %1286 = vmatpush1.msra.mxu0 %v1250
    %1287 = vmatprep.subr.mxu0 0.0
    %1288 = vmatpush2.msra.mxu0 0.0
    %1289 = vmatprep.subr.mxu0 0.0
    %1290 = vmatpush2.msra.mxu0 0.0
    %1291 = vmatprep.subr.mxu0 0.0
    %1292 = vmatpush2.msra.mxu0 0.0
    %1293 = vmatprep.subr.mxu0 0.0
    %1294 = vmatpush2.msra.mxu0 0.0
    %1295 = vmatprep.subr.mxu0 0.0
    %1296 = vmatpush2.msra.mxu0 0.0
    %1297 = vmatprep.subr.mxu0 0.0
    %1298 = vmatpush2.msra.mxu0 0.0
    %1299 = vmatprep.subr.mxu0 0.0
    %1300 = vmatpush2.msra.mxu0 0.0
    %1301 = vmatprep.subr.mxu0 0.0
    %1302 = vmatpush2.msra.mxu0 0.0
    %1303 = vmatprep.subr.mxu0 0.0
    %1304 = vmatpush2.msra.mxu0 0.0
    %1305 = vmatprep.subr.mxu0 0.0
    %1306 = vmatpush2.msra.mxu0 0.0
    %1307 = vmatprep.subr.mxu0 0.0
    %1308 = vmatpush2.msra.mxu0 0.0
    %1309 = vmatprep.subr.mxu0 0.0
    %1310 = vmatpush2.msra.mxu0 0.0
    %1311 = vmatprep.subr.mxu0 0.0
    %1312 = vmatpush2.msra.mxu0 0.0
    %1313 = vmatprep.subr.mxu0 0.0
    %1314 = vmatpush2.msra.mxu0 0.0
    %1315 = vmatprep.subr.mxu0 0.0
    %1316 = vmatpush2.msra.mxu0 0.0
    %1317 = vmatprep.subr.mxu0 0.0
    %1318 = vmatpush2.msra.mxu0 0.0
    %1319 = vmatprep.mubr.f32.mxu0 0.0
    %1320 = vmatmul.mubr.f32.gmra.mxu0 %v1253
    %v1321 = vpop.f32.mrf.mxu0
    %v1322 = vadd.f32 0.0, %v1321
    %v1323 = vpop.f32.mrf.mxu0
    %1324 = vdwg.mxu0
    %v1326 = vsel %vm171, %v1246, 0
    %v1329 = vsel %vm171, %v1322, 0
    %1331 = vmatprep.subr.mxu0 0.0
    %1332 = vmatpush1.msra.mxu0 0.0
    %1333 = vmatprep.subr.mxu0 0.0
    %1334 = vmatpush1.msra.mxu0 0.0
    %1335 = vmatprep.subr.mxu0 0.0
    %1336 = vmatpush1.msra.mxu0 0.0
    %1337 = vmatprep.subr.mxu0 0.0
    %1338 = vmatpush1.msra.mxu0 0.0
    %1339 = vmatprep.subr.mxu0 0.0
    %1340 = vmatpush1.msra.mxu0 0.0
    %1341 = vmatprep.subr.mxu0 0.0
    %1342 = vmatpush1.msra.mxu0 0.0
    %1343 = vmatprep.subr.mxu0 0.0
    %1344 = vmatpush1.msra.mxu0 0.0
    %1345 = vmatprep.subr.mxu0 0.0
    %1346 = vmatpush1.msra.mxu0 0.0
    %1347 = vmatprep.subr.mxu0 0.0
    %1348 = vmatpush1.msra.mxu0 0.0
    %1349 = vmatprep.subr.mxu0 0.0
    %1350 = vmatpush1.msra.mxu0 0.0
    %1351 = vmatprep.subr.mxu0 0.0
    %1352 = vmatpush1.msra.mxu0 0.0
    %1353 = vmatprep.subr.mxu0 0.0
    %1354 = vmatpush1.msra.mxu0 0.0
    %1355 = vmatprep.subr.mxu0 0.0
    %1356 = vmatpush1.msra.mxu0 0.0
    %1357 = vmatprep.subr.mxu0 0.0
    %1358 = vmatpush1.msra.mxu0 0.0
    %1359 = vmatprep.subr.mxu0 0.0
    %1360 = vmatpush1.msra.mxu0 0.0
    %1361 = vmatprep.subr.mxu0 0.0
    %1362 = vmatpush1.msra.mxu0 %v166
    %1363 = vmatprep.subr.mxu0 0.0
    %1364 = vmatpush2.msra.mxu0 0.0
    %1365 = vmatprep.subr.mxu0 0.0
    %1366 = vmatpush2.msra.mxu0 0.0
    %1367 = vmatprep.subr.mxu0 0.0
    %1368 = vmatpush2.msra.mxu0 0.0
    %1369 = vmatprep.subr.mxu0 0.0
    %1370 = vmatpush2.msra.mxu0 0.0
    %1371 = vmatprep.subr.mxu0 0.0
    %1372 = vmatpush2.msra.mxu0 0.0
    %1373 = vmatprep.subr.mxu0 0.0
    %1374 = vmatpush2.msra.mxu0 0.0
    %1375 = vmatprep.subr.mxu0 0.0
    %1376 = vmatpush2.msra.mxu0 0.0
    %1377 = vmatprep.subr.mxu0 0.0
    %1378 = vmatpush2.msra.mxu0 0.0
    %1379 = vmatprep.subr.mxu0 0.0
    %1380 = vmatpush2.msra.mxu0 0.0
    %1381 = vmatprep.subr.mxu0 0.0
    %1382 = vmatpush2.msra.mxu0 0.0
    %1383 = vmatprep.subr.mxu0 0.0
    %1384 = vmatpush2.msra.mxu0 0.0
    %1385 = vmatprep.subr.mxu0 0.0
    %1386 = vmatpush2.msra.mxu0 0.0
    %1387 = vmatprep.subr.mxu0 0.0
    %1388 = vmatpush2.msra.mxu0 0.0
    %1389 = vmatprep.subr.mxu0 0.0
    %1390 = vmatpush2.msra.mxu0 0.0
    %1391 = vmatprep.subr.mxu0 0.0
    %1392 = vmatpush2.msra.mxu0 0.0
    %1393 = vmatprep.subr.mxu0 0.0
    %1394 = vmatpush2.msra.mxu0 0.0
    %1395 = vmatprep.mubr.f32.mxu0 0.0
    %1396 = vmatmul.mubr.f32.gmra.mxu0 %v1326
    %v1397 = vpop.f32.mrf.mxu0
    %v1398 = vadd.f32 0.0, %v1397
    %v1399 = vpop.f32.mrf.mxu0
    %1400 = vmatprep.mubr.f32.mxu0 0.0
    %1401 = vmatmul.mubr.f32.gmra.mxu0 %v1329
    %v1402 = vpop.f32.mrf.mxu0
    %v1403 = vadd.f32 0.0, %v1402
    %v1404 = vpop.f32.mrf.mxu0
    %1405 = vdwg.mxu0
    %v1406 = vadd.f32 %v985, %v1398
    %v1407 = vadd.f32 %v990, %v1403
    %1408 = vrot.lane.b32.xlu0 %v150, 104
    %v1409 = vpop.permute.xlu0 %1408
    %1410 = vrot.lane.b32.xlu0 %v150, 72
    %v1411 = vpop.permute.xlu0 %1410
    %v1412 = vsel %vm171, %v1409, 0
    %v1414 = vsel %vm171, %v1411, 0
    %1416 = vmatprep.subr.mxu0 0.0
    %1417 = vmatpush1.xpose.msra.mxu0 0.0
    %1418 = vmatprep.subr.mxu0 0.0
    %1419 = vmatpush1.xpose.msra.mxu0 0.0
    %1420 = vmatprep.subr.mxu0 0.0
    %1421 = vmatpush1.xpose.msra.mxu0 0.0
    %1422 = vmatprep.subr.mxu0 0.0
    %1423 = vmatpush1.xpose.msra.mxu0 0.0
    %1424 = vmatprep.subr.mxu0 0.0
    %1425 = vmatpush1.xpose.msra.mxu0 0.0
    %1426 = vmatprep.subr.mxu0 0.0
    %1427 = vmatpush1.xpose.msra.mxu0 0.0
    %1428 = vmatprep.subr.mxu0 0.0
    %1429 = vmatpush1.xpose.msra.mxu0 0.0
    %1430 = vmatprep.subr.mxu0 0.0
    %1431 = vmatpush1.xpose.msra.mxu0 0.0
    %1432 = vmatprep.subr.mxu0 0.0
    %1433 = vmatpush1.xpose.msra.mxu0 0.0
    %1434 = vmatprep.subr.mxu0 0.0
    %1435 = vmatpush1.xpose.msra.mxu0 0.0
    %1436 = vmatprep.subr.mxu0 0.0
    %1437 = vmatpush1.xpose.msra.mxu0 0.0
    %1438 = vmatprep.subr.mxu0 0.0
    %1439 = vmatpush1.xpose.msra.mxu0 0.0
    %1440 = vmatprep.subr.mxu0 0.0
    %1441 = vmatpush1.xpose.msra.mxu0 0.0
    %1442 = vmatprep.subr.mxu0 0.0
    %1443 = vmatpush1.xpose.msra.mxu0 0.0
    %1444 = vmatprep.subr.mxu0 0.0
    %1445 = vmatpush1.xpose.msra.mxu0 0.0
    %1446 = vmatprep.subr.mxu0 0.0
    %1447 = vmatpush1.xpose.msra.mxu0 %v1414
    %1448 = vmatprep.subr.mxu0 0.0
    %1449 = vmatpush2.xpose.msra.mxu0 0.0
    %1450 = vmatprep.subr.mxu0 0.0
    %1451 = vmatpush2.xpose.msra.mxu0 0.0
    %1452 = vmatprep.subr.mxu0 0.0
    %1453 = vmatpush2.xpose.msra.mxu0 0.0
    %1454 = vmatprep.subr.mxu0 0.0
    %1455 = vmatpush2.xpose.msra.mxu0 0.0
    %1456 = vmatprep.subr.mxu0 0.0
    %1457 = vmatpush2.xpose.msra.mxu0 0.0
    %1458 = vmatprep.subr.mxu0 0.0
    %1459 = vmatpush2.xpose.msra.mxu0 0.0
    %1460 = vmatprep.subr.mxu0 0.0
    %1461 = vmatpush2.xpose.msra.mxu0 0.0
    %1462 = vmatprep.subr.mxu0 0.0
    %1463 = vmatpush2.xpose.msra.mxu0 0.0
    %1464 = vmatprep.subr.mxu0 0.0
    %1465 = vmatpush2.xpose.msra.mxu0 0.0
    %1466 = vmatprep.subr.mxu0 0.0
    %1467 = vmatpush2.xpose.msra.mxu0 0.0
    %1468 = vmatprep.subr.mxu0 0.0
    %1469 = vmatpush2.xpose.msra.mxu0 0.0
    %1470 = vmatprep.subr.mxu0 0.0
    %1471 = vmatpush2.xpose.msra.mxu0 0.0
    %1472 = vmatprep.subr.mxu0 0.0
    %1473 = vmatpush2.xpose.msra.mxu0 0.0
    %1474 = vmatprep.subr.mxu0 0.0
    %1475 = vmatpush2.xpose.msra.mxu0 0.0
    %1476 = vmatprep.subr.mxu0 0.0
    %1477 = vmatpush2.xpose.msra.mxu0 0.0
    %1478 = vmatprep.subr.mxu0 0.0
    %1479 = vmatpush2.xpose.msra.mxu0 0.0
    %1480 = vmatprep.mubr.f32.mxu0 0.0
    %1481 = vmatmul.mubr.f32.gmra.mxu0 %v1412
    %v1482 = vpop.f32.mrf.mxu0
    %v1483 = vadd.f32 0.0, %v1482
    %v1484 = vpop.f32.mrf.mxu0
    %1485 = vdwg.mxu0
    %1486 = vrot.lane.b32.xlu0 %v155, 104
    %v1487 = vpop.permute.xlu0 %1486
    %1488 = vrot.lane.b32.xlu0 %v155, 72
    %v1489 = vpop.permute.xlu0 %1488
    %v1490 = vsel %vm171, %v1487, 0
    %v1492 = vsel %vm171, %v1489, 0
    %1494 = vmatprep.subr.mxu0 0.0
    %1495 = vmatpush1.xpose.msra.mxu0 0.0
    %1496 = vmatprep.subr.mxu0 0.0
    %1497 = vmatpush1.xpose.msra.mxu0 0.0
    %1498 = vmatprep.subr.mxu0 0.0
    %1499 = vmatpush1.xpose.msra.mxu0 0.0
    %1500 = vmatprep.subr.mxu0 0.0
    %1501 = vmatpush1.xpose.msra.mxu0 0.0
    %1502 = vmatprep.subr.mxu0 0.0
    %1503 = vmatpush1.xpose.msra.mxu0 0.0
    %1504 = vmatprep.subr.mxu0 0.0
    %1505 = vmatpush1.xpose.msra.mxu0 0.0
    %1506 = vmatprep.subr.mxu0 0.0
    %1507 = vmatpush1.xpose.msra.mxu0 0.0
    %1508 = vmatprep.subr.mxu0 0.0
    %1509 = vmatpush1.xpose.msra.mxu0 0.0
    %1510 = vmatprep.subr.mxu0 0.0
    %1511 = vmatpush1.xpose.msra.mxu0 0.0
    %1512 = vmatprep.subr.mxu0 0.0
    %1513 = vmatpush1.xpose.msra.mxu0 0.0
    %1514 = vmatprep.subr.mxu0 0.0
    %1515 = vmatpush1.xpose.msra.mxu0 0.0
    %1516 = vmatprep.subr.mxu0 0.0
    %1517 = vmatpush1.xpose.msra.mxu0 0.0
    %1518 = vmatprep.subr.mxu0 0.0
    %1519 = vmatpush1.xpose.msra.mxu0 0.0
    %1520 = vmatprep.subr.mxu0 0.0
    %1521 = vmatpush1.xpose.msra.mxu0 0.0
    %1522 = vmatprep.subr.mxu0 0.0
    %1523 = vmatpush1.xpose.msra.mxu0 0.0
    %1524 = vmatprep.subr.mxu0 0.0
    %1525 = vmatpush1.xpose.msra.mxu0 %v1492
    %1526 = vmatprep.subr.mxu0 0.0
    %1527 = vmatpush2.xpose.msra.mxu0 0.0
    %1528 = vmatprep.subr.mxu0 0.0
    %1529 = vmatpush2.xpose.msra.mxu0 0.0
    %1530 = vmatprep.subr.mxu0 0.0
    %1531 = vmatpush2.xpose.msra.mxu0 0.0
    %1532 = vmatprep.subr.mxu0 0.0
    %1533 = vmatpush2.xpose.msra.mxu0 0.0
    %1534 = vmatprep.subr.mxu0 0.0
    %1535 = vmatpush2.xpose.msra.mxu0 0.0
    %1536 = vmatprep.subr.mxu0 0.0
    %1537 = vmatpush2.xpose.msra.mxu0 0.0
    %1538 = vmatprep.subr.mxu0 0.0
    %1539 = vmatpush2.xpose.msra.mxu0 0.0
    %1540 = vmatprep.subr.mxu0 0.0
    %1541 = vmatpush2.xpose.msra.mxu0 0.0
    %1542 = vmatprep.subr.mxu0 0.0
    %1543 = vmatpush2.xpose.msra.mxu0 0.0
    %1544 = vmatprep.subr.mxu0 0.0
    %1545 = vmatpush2.xpose.msra.mxu0 0.0
    %1546 = vmatprep.subr.mxu0 0.0
    %1547 = vmatpush2.xpose.msra.mxu0 0.0
    %1548 = vmatprep.subr.mxu0 0.0
    %1549 = vmatpush2.xpose.msra.mxu0 0.0
    %1550 = vmatprep.subr.mxu0 0.0
    %1551 = vmatpush2.xpose.msra.mxu0 0.0
    %1552 = vmatprep.subr.mxu0 0.0
    %1553 = vmatpush2.xpose.msra.mxu0 0.0
    %1554 = vmatprep.subr.mxu0 0.0
    %1555 = vmatpush2.xpose.msra.mxu0 0.0
    %1556 = vmatprep.subr.mxu0 0.0
    %1557 = vmatpush2.xpose.msra.mxu0 0.0
    %1558 = vmatprep.mubr.f32.mxu0 0.0
    %1559 = vmatmul.mubr.f32.gmra.mxu0 %v1490
    %v1560 = vpop.f32.mrf.mxu0
    %v1561 = vadd.f32 0.0, %v1560
    %v1562 = vpop.f32.mrf.mxu0
    %1563 = vdwg.mxu0
    %v1564 = vsel %vm162, -1e+18, %v1483
    %v1565 = vsel %vm163, -1e+18, %v1561
    %v1566 = vsel %vm171, %v1564, -inf
    %1567 = vmax.xlane.f32.xlu0 %v1566
    %v1568 = vpop.xlane.xlu0 %1567
    %v1569 = vsel %vm171, %v1565, -inf
    %1570 = vmax.xlane.f32.xlu0 %v1569
    %v1571 = vpop.xlane.xlu0 %1570
    %v1572 = vsub.f32 %v1564, %v1568
    %v1573 = vsub.f32 %v1565, %v1571
    %v1574 = vmul.f32 %v1572, 1.442695
    %v1575 = vpow.pop %v1574
    %v1576 = vmul.f32 %v1573, 1.442695
    %v1577 = vpow.pop %v1576
    %v1578 = vsel %vm171, %v1575, 0.0
    %1579 = vadd.xlane.f32.xlu0 %v1578
    %v1580 = vpop.xlane.xlu0 %1579
    %v1581 = vsel %vm171, %v1577, 0.0
    %1582 = vadd.xlane.f32.xlu0 %v1581
    %v1583 = vpop.xlane.xlu0 %1582
    %v1584 = vrcp.pop %v1580
    %v1585 = vrcp.pop %v1583
    %v1586 = vmul.f32 %v1575, %v1584
    %v1587 = vmul.f32 %v1577, %v1585
    %1588 = vrot.lane.b32.xlu0 %v150, 40
    %v1589 = vpop.permute.xlu0 %1588
    %v1592 = vsel %vm171, %v1586, 0
    %1594 = vmatprep.subr.mxu0 0.0
    %1595 = vmatpush1.msra.mxu0 0.0
    %1596 = vmatprep.subr.mxu0 0.0
    %1597 = vmatpush1.msra.mxu0 0.0
    %1598 = vmatprep.subr.mxu0 0.0
    %1599 = vmatpush1.msra.mxu0 0.0
    %1600 = vmatprep.subr.mxu0 0.0
    %1601 = vmatpush1.msra.mxu0 0.0
    %1602 = vmatprep.subr.mxu0 0.0
    %1603 = vmatpush1.msra.mxu0 0.0
    %1604 = vmatprep.subr.mxu0 0.0
    %1605 = vmatpush1.msra.mxu0 0.0
    %1606 = vmatprep.subr.mxu0 0.0
    %1607 = vmatpush1.msra.mxu0 0.0
    %1608 = vmatprep.subr.mxu0 0.0
    %1609 = vmatpush1.msra.mxu0 0.0
    %1610 = vmatprep.subr.mxu0 0.0
    %1611 = vmatpush1.msra.mxu0 0.0
    %1612 = vmatprep.subr.mxu0 0.0
    %1613 = vmatpush1.msra.mxu0 0.0
    %1614 = vmatprep.subr.mxu0 0.0
    %1615 = vmatpush1.msra.mxu0 0.0
    %1616 = vmatprep.subr.mxu0 0.0
    %1617 = vmatpush1.msra.mxu0 0.0
    %1618 = vmatprep.subr.mxu0 0.0
    %1619 = vmatpush1.msra.mxu0 0.0
    %1620 = vmatprep.subr.mxu0 0.0
    %1621 = vmatpush1.msra.mxu0 0.0
    %1622 = vmatprep.subr.mxu0 0.0
    %1623 = vmatpush1.msra.mxu0 0.0
    %1624 = vmatprep.subr.mxu0 0.0
    %1625 = vmatpush1.msra.mxu0 %v1589
    %1626 = vmatprep.subr.mxu0 0.0
    %1627 = vmatpush2.msra.mxu0 0.0
    %1628 = vmatprep.subr.mxu0 0.0
    %1629 = vmatpush2.msra.mxu0 0.0
    %1630 = vmatprep.subr.mxu0 0.0
    %1631 = vmatpush2.msra.mxu0 0.0
    %1632 = vmatprep.subr.mxu0 0.0
    %1633 = vmatpush2.msra.mxu0 0.0
    %1634 = vmatprep.subr.mxu0 0.0
    %1635 = vmatpush2.msra.mxu0 0.0
    %1636 = vmatprep.subr.mxu0 0.0
    %1637 = vmatpush2.msra.mxu0 0.0
    %1638 = vmatprep.subr.mxu0 0.0
    %1639 = vmatpush2.msra.mxu0 0.0
    %1640 = vmatprep.subr.mxu0 0.0
    %1641 = vmatpush2.msra.mxu0 0.0
    %1642 = vmatprep.subr.mxu0 0.0
    %1643 = vmatpush2.msra.mxu0 0.0
    %1644 = vmatprep.subr.mxu0 0.0
    %1645 = vmatpush2.msra.mxu0 0.0
    %1646 = vmatprep.subr.mxu0 0.0
    %1647 = vmatpush2.msra.mxu0 0.0
    %1648 = vmatprep.subr.mxu0 0.0
    %1649 = vmatpush2.msra.mxu0 0.0
    %1650 = vmatprep.subr.mxu0 0.0
    %1651 = vmatpush2.msra.mxu0 0.0
    %1652 = vmatprep.subr.mxu0 0.0
    %1653 = vmatpush2.msra.mxu0 0.0
    %1654 = vmatprep.subr.mxu0 0.0
    %1655 = vmatpush2.msra.mxu0 0.0
    %1656 = vmatprep.subr.mxu0 0.0
    %1657 = vmatpush2.msra.mxu0 0.0
    %1658 = vmatprep.mubr.f32.mxu0 0.0
    %1659 = vmatmul.mubr.f32.gmra.mxu0 %v1592
    %v1660 = vpop.f32.mrf.mxu0
    %v1661 = vadd.f32 0.0, %v1660
    %v1662 = vpop.f32.mrf.mxu0
    %1663 = vdwg.mxu0
    %1664 = vrot.lane.b32.xlu0 %v155, 40
    %v1665 = vpop.permute.xlu0 %1664
    %v1668 = vsel %vm171, %v1587, 0
    %1670 = vmatprep.subr.mxu0 0.0
    %1671 = vmatpush1.msra.mxu0 0.0
    %1672 = vmatprep.subr.mxu0 0.0
    %1673 = vmatpush1.msra.mxu0 0.0
    %1674 = vmatprep.subr.mxu0 0.0
    %1675 = vmatpush1.msra.mxu0 0.0
    %1676 = vmatprep.subr.mxu0 0.0
    %1677 = vmatpush1.msra.mxu0 0.0
    %1678 = vmatprep.subr.mxu0 0.0
    %1679 = vmatpush1.msra.mxu0 0.0
    %1680 = vmatprep.subr.mxu0 0.0
    %1681 = vmatpush1.msra.mxu0 0.0
    %1682 = vmatprep.subr.mxu0 0.0
    %1683 = vmatpush1.msra.mxu0 0.0
    %1684 = vmatprep.subr.mxu0 0.0
    %1685 = vmatpush1.msra.mxu0 0.0
    %1686 = vmatprep.subr.mxu0 0.0
    %1687 = vmatpush1.msra.mxu0 0.0
    %1688 = vmatprep.subr.mxu0 0.0
    %1689 = vmatpush1.msra.mxu0 0.0
    %1690 = vmatprep.subr.mxu0 0.0
    %1691 = vmatpush1.msra.mxu0 0.0
    %1692 = vmatprep.subr.mxu0 0.0
    %1693 = vmatpush1.msra.mxu0 0.0
    %1694 = vmatprep.subr.mxu0 0.0
    %1695 = vmatpush1.msra.mxu0 0.0
    %1696 = vmatprep.subr.mxu0 0.0
    %1697 = vmatpush1.msra.mxu0 0.0
    %1698 = vmatprep.subr.mxu0 0.0
    %1699 = vmatpush1.msra.mxu0 0.0
    %1700 = vmatprep.subr.mxu0 0.0
    %1701 = vmatpush1.msra.mxu0 %v1665
    %1702 = vmatprep.subr.mxu0 0.0
    %1703 = vmatpush2.msra.mxu0 0.0
    %1704 = vmatprep.subr.mxu0 0.0
    %1705 = vmatpush2.msra.mxu0 0.0
    %1706 = vmatprep.subr.mxu0 0.0
    %1707 = vmatpush2.msra.mxu0 0.0
    %1708 = vmatprep.subr.mxu0 0.0
    %1709 = vmatpush2.msra.mxu0 0.0
    %1710 = vmatprep.subr.mxu0 0.0
    %1711 = vmatpush2.msra.mxu0 0.0
    %1712 = vmatprep.subr.mxu0 0.0
    %1713 = vmatpush2.msra.mxu0 0.0
    %1714 = vmatprep.subr.mxu0 0.0
    %1715 = vmatpush2.msra.mxu0 0.0
    %1716 = vmatprep.subr.mxu0 0.0
    %1717 = vmatpush2.msra.mxu0 0.0
    %1718 = vmatprep.subr.mxu0 0.0
    %1719 = vmatpush2.msra.mxu0 0.0
    %1720 = vmatprep.subr.mxu0 0.0
    %1721 = vmatpush2.msra.mxu0 0.0
    %1722 = vmatprep.subr.mxu0 0.0
    %1723 = vmatpush2.msra.mxu0 0.0
    %1724 = vmatprep.subr.mxu0 0.0
    %1725 = vmatpush2.msra.mxu0 0.0
    %1726 = vmatprep.subr.mxu0 0.0
    %1727 = vmatpush2.msra.mxu0 0.0
    %1728 = vmatprep.subr.mxu0 0.0
    %1729 = vmatpush2.msra.mxu0 0.0
    %1730 = vmatprep.subr.mxu0 0.0
    %1731 = vmatpush2.msra.mxu0 0.0
    %1732 = vmatprep.subr.mxu0 0.0
    %1733 = vmatpush2.msra.mxu0 0.0
    %1734 = vmatprep.mubr.f32.mxu0 0.0
    %1735 = vmatmul.mubr.f32.gmra.mxu0 %v1668
    %v1736 = vpop.f32.mrf.mxu0
    %v1737 = vadd.f32 0.0, %v1736
    %v1738 = vpop.f32.mrf.mxu0
    %1739 = vdwg.mxu0
    %v1741 = vsel %vm171, %v1661, 0
    %v1744 = vsel %vm171, %v1737, 0
    %1746 = vmatprep.subr.mxu0 0.0
    %1747 = vmatpush1.msra.mxu0 0.0
    %1748 = vmatprep.subr.mxu0 0.0
    %1749 = vmatpush1.msra.mxu0 0.0
    %1750 = vmatprep.subr.mxu0 0.0
    %1751 = vmatpush1.msra.mxu0 0.0
    %1752 = vmatprep.subr.mxu0 0.0
    %1753 = vmatpush1.msra.mxu0 0.0
    %1754 = vmatprep.subr.mxu0 0.0
    %1755 = vmatpush1.msra.mxu0 0.0
    %1756 = vmatprep.subr.mxu0 0.0
    %1757 = vmatpush1.msra.mxu0 0.0
    %1758 = vmatprep.subr.mxu0 0.0
    %1759 = vmatpush1.msra.mxu0 0.0
    %1760 = vmatprep.subr.mxu0 0.0
    %1761 = vmatpush1.msra.mxu0 0.0
    %1762 = vmatprep.subr.mxu0 0.0
    %1763 = vmatpush1.msra.mxu0 0.0
    %1764 = vmatprep.subr.mxu0 0.0
    %1765 = vmatpush1.msra.mxu0 0.0
    %1766 = vmatprep.subr.mxu0 0.0
    %1767 = vmatpush1.msra.mxu0 0.0
    %1768 = vmatprep.subr.mxu0 0.0
    %1769 = vmatpush1.msra.mxu0 0.0
    %1770 = vmatprep.subr.mxu0 0.0
    %1771 = vmatpush1.msra.mxu0 0.0
    %1772 = vmatprep.subr.mxu0 0.0
    %1773 = vmatpush1.msra.mxu0 0.0
    %1774 = vmatprep.subr.mxu0 0.0
    %1775 = vmatpush1.msra.mxu0 0.0
    %1776 = vmatprep.subr.mxu0 0.0
    %1777 = vmatpush1.msra.mxu0 %v167
    %1778 = vmatprep.subr.mxu0 0.0
    %1779 = vmatpush2.msra.mxu0 0.0
    %1780 = vmatprep.subr.mxu0 0.0
    %1781 = vmatpush2.msra.mxu0 0.0
    %1782 = vmatprep.subr.mxu0 0.0
    %1783 = vmatpush2.msra.mxu0 0.0
    %1784 = vmatprep.subr.mxu0 0.0
    %1785 = vmatpush2.msra.mxu0 0.0
    %1786 = vmatprep.subr.mxu0 0.0
    %1787 = vmatpush2.msra.mxu0 0.0
    %1788 = vmatprep.subr.mxu0 0.0
    %1789 = vmatpush2.msra.mxu0 0.0
    %1790 = vmatprep.subr.mxu0 0.0
    %1791 = vmatpush2.msra.mxu0 0.0
    %1792 = vmatprep.subr.mxu0 0.0
    %1793 = vmatpush2.msra.mxu0 0.0
    %1794 = vmatprep.subr.mxu0 0.0
    %1795 = vmatpush2.msra.mxu0 0.0
    %1796 = vmatprep.subr.mxu0 0.0
    %1797 = vmatpush2.msra.mxu0 0.0
    %1798 = vmatprep.subr.mxu0 0.0
    %1799 = vmatpush2.msra.mxu0 0.0
    %1800 = vmatprep.subr.mxu0 0.0
    %1801 = vmatpush2.msra.mxu0 0.0
    %1802 = vmatprep.subr.mxu0 0.0
    %1803 = vmatpush2.msra.mxu0 0.0
    %1804 = vmatprep.subr.mxu0 0.0
    %1805 = vmatpush2.msra.mxu0 0.0
    %1806 = vmatprep.subr.mxu0 0.0
    %1807 = vmatpush2.msra.mxu0 0.0
    %1808 = vmatprep.subr.mxu0 0.0
    %1809 = vmatpush2.msra.mxu0 0.0
    %1810 = vmatprep.mubr.f32.mxu0 0.0
    %1811 = vmatmul.mubr.f32.gmra.mxu0 %v1741
    %v1812 = vpop.f32.mrf.mxu0
    %v1813 = vadd.f32 0.0, %v1812
    %v1814 = vpop.f32.mrf.mxu0
    %1815 = vmatprep.mubr.f32.mxu0 0.0
    %1816 = vmatmul.mubr.f32.gmra.mxu0 %v1744
    %v1817 = vpop.f32.mrf.mxu0
    %v1818 = vadd.f32 0.0, %v1817
    %v1819 = vpop.f32.mrf.mxu0
    %1820 = vdwg.mxu0
    %v1821 = vadd.f32 %v1406, %v1813
    %v1822 = vadd.f32 %v1407, %v1818
    %v1823 = vld [vmem:[#allocation7] sm:$0x1]
    %v1825 = vlaneseq
    %v1826 = vshrl.u32 %v1825, 7
    %v1827 = vsub.s32 0, %v1826
    %v1828 = vrot.slane %v1823, %v1827
    %v1830 = vadd.f32 %v1821, %v1828
    %v1831 = vadd.f32 %v1822, %v1828
    %1832 = vst.msk [vmem:[#allocation8] sm:$0xff] %vm76, %v1830
    %1833 = vst.msk [vmem:[#allocation8 + $0x8] sm:$0xff] %vm76, %v1831
    // Predicated region
    $region38: #{run.1} parent=1 // pred_check
      _
    $region39: #{run.1} parent=1 // pred_check_branch
      %1835 = sbr.rel (0) target = $region41
    $region40: #{run.1} parent=1 // pred_region
      %s1837 = ssub.s32 256, 256
      %1838 = vsyncadd [#allocation4], %s1837
      %s1839 = sshll.u32 [#allocation8], 4
      %s1840 = int_to_ptr.vmem [resolvable:$true] %s1839
      %1845 = dma.vmem_to_hbm [thread:$0]  %s1840, 256, %s6, [#allocation4], 128, 128, 8
    $region41: #{run.1} parent=1 // pred_fallthru
      _
    // Predicated region
    $region42: #{run.1} parent=1 // pred_check
      _
    $region43: #{run.1} parent=1 // pred_check_branch
      %1847 = sbr.rel (0) target = $region45
    $region44: #{run.1} parent=1 // pred_region
      %1848 = dma.done [#allocation4], 256
    $region45: #{run.1} parent=1 // pred_fallthru
      _
    %1849 = vsyncpa [#allocation3], 1
    %1850 = vsyncpa [#allocation6], 1
    %1851 = vsyncpa [#allocation4], 1

</llo_original>
